<compile_context>
chip_gen: v7x
topology: tpu7x:2x2x1
jax: 0.10.0
libtpu: 0.0.40
codegen_flags: <defaults>
</compile_context>

<pallas_src>
import numpy as np
import jax
import jax.numpy as jnp
from jax.experimental import pallas as pl
from jax.experimental.pallas import tpu as pltpu


# --------------------------------------------------------------------------- #
# Kernels
# --------------------------------------------------------------------------- #
def deepfm_gather_kernel(featsT_ref, valsT_ref, tableT_ref, w1t_ref, w2_ref,
                         scal_ref, out_ref, onehot_scratch, emb_scratch):
    """Small-vocab path: in-kernel embedding gather via one-hot MXU matmul.

    Per batch tile (batch on the LANE axis):
      featsT_ref : (F, Bt)   int32  feature ids (field-major)
      valsT_ref  : (F, Bt)   f32    feature values
      tableT_ref : (Kp+1, V) f32    rows 0..Kp-1 = embedding.T (K padded to Kp),
                                    row Kp       = first-order weights.T
      w1t_ref    : (H, F*Kp) f32    first FC layer, transposed
      w2_ref     : (H, 1)    f32    second (1-unit) FC layer
      scal_ref   : (3,)      f32    [bias, b1, b2] in SMEM
      out_ref    : (1, Bt)   f32    sigmoid output (lane-dense)
      onehot_scratch : (V, Bt)    VMEM staging for the one-hot (bounds vregs)
      emb_scratch    : (F*Kp, Bt) VMEM raw-embedding slab feeding the MLP matmul
    """
    F, _ = featsT_ref.shape
    kp1, V = tableT_ref.shape
    Kp = kp1 - 1
    Bt = featsT_ref.shape[1]
    bias = scal_ref[0]
    b1 = scal_ref[1]
    b2 = scal_ref[2]

    # Tiny column iota, hoisted once (JAX does not CSE broadcasts).
    vocab_col = jax.lax.broadcasted_iota(jnp.int32, (V, 1), 0)

    t1 = jnp.zeros((Kp, Bt), jnp.float32)     # FM: sum_f e*v        (per k)
    s2 = jnp.zeros((1, Bt), jnp.float32)      # FM: sum_{f,k} (e*v)^2
    first = jnp.zeros((1, Bt), jnp.float32)   # first order: sum_f w*v

    for f in range(F):                        # static unroll, F is small
        idx_f = featsT_ref[f:f + 1, :]        # (1, Bt)
        v_f = valsT_ref[f:f + 1, :]           # (1, Bt)
        # One-hot vocab mask, staged through VMEM so its vregs die immediately
        # and the (idle) MXU streams it back as the matmul RHS.
        onehot_scratch[...] = (vocab_col == idx_f).astype(jnp.float32)   # (V, Bt)
        g = jnp.dot(tableT_ref[...], onehot_scratch[...],
                    preferred_element_type=jnp.float32)                  # (Kp+1, Bt)
        e_f = g[0:Kp, :]                      # raw embedding rows (Kp, Bt)
        emb_scratch[f * Kp:(f + 1) * Kp, :] = e_f
        ev = e_f * v_f
        first = first + g[Kp:Kp + 1, :] * v_f
        t1 = t1 + ev
        s2 = s2 + jnp.sum(ev * ev, axis=0, keepdims=True)

    first = first + bias
    second = 0.5 * (jnp.sum(t1 * t1, axis=0, keepdims=True) - s2)

    # MLP head: one MXU matmul over the VMEM-resident slab; the final 1-unit FC
    # is a VPU multiply + sublane reduce (no 1-column MXU matmul).
    h = jnp.dot(w1t_ref[...], emb_scratch[...], preferred_element_type=jnp.float32)
    h = jnp.maximum(h + b1, 0.0)
    h2 = jnp.sum(h * w2_ref[...], axis=0, keepdims=True) + b2
    h2 = jnp.maximum(h2, 0.0)

    out_ref[...] = jax.nn.sigmoid(first + second + h2)


def deepfm_slab_kernel(vw_ref, embT_ref, w1t_ref, w2_ref, scal_ref, out_ref,
                       emb_scratch):
    """Large-vocab path: pre-gathered, lane-dense bfloat16 embedding slab.

      vw_ref   : (2F, Bt)   f32   rows 0..F-1 = values, rows F..2F-1 = w[feats]
      embT_ref : (F*Kp, Bt) bf16  gathered raw embeddings (batch on lanes)
      emb_scratch : (F*Kp, Bt) f32 VMEM upcast of the slab (single full load)
    """
    F2, Bt = vw_ref.shape
    F = F2 // 2
    FKp = embT_ref.shape[0]
    Kp = FKp // F
    bias = scal_ref[0]
    b1 = scal_ref[1]
    b2 = scal_ref[2]

    # Upcast the bf16 HBM slab exactly once into an f32 VMEM scratch (full-ref
    # load, so no packed-dtype sub-slicing); later slices are aligned f32.
    emb_scratch[...] = embT_ref[...].astype(jnp.float32)

    vals = vw_ref[0:F, :]                     # (F, Bt)
    wfeat = vw_ref[F:2 * F, :]                # (F, Bt)
    first = jnp.sum(wfeat * vals, axis=0, keepdims=True) + bias

    t1 = jnp.zeros((Kp, Bt), jnp.float32)
    s2 = jnp.zeros((1, Bt), jnp.float32)
    for f in range(F):                        # per-field scratch slices: short live ranges
        e_f = emb_scratch[f * Kp:(f + 1) * Kp, :]
        ev = e_f * vals[f:f + 1, :]
        t1 = t1 + ev
        s2 = s2 + jnp.sum(ev * ev, axis=0, keepdims=True)
    second = 0.5 * (jnp.sum(t1 * t1, axis=0, keepdims=True) - s2)

    h = jnp.dot(w1t_ref[...], emb_scratch[...], preferred_element_type=jnp.float32)
    h = jnp.maximum(h + b1, 0.0)
    h2 = jnp.sum(h * w2_ref[...], axis=0, keepdims=True) + b2
    h2 = jnp.maximum(h2, 0.0)

    out_ref[...] = jax.nn.sigmoid(first + second + h2)


# --------------------------------------------------------------------------- #
# Wrapper
# --------------------------------------------------------------------------- #
def _round_up(x, m):
    return ((x + m - 1) // m) * m


def _choose_block(batch, max_block):
    """Lane-tile width: full batch for small B, otherwise a 128-multiple tile
    that yields at least two grid steps (keeps both v7x TensorCores busy),
    capped at max_block so live vector state stays near the 64-vreg file while
    still amortizing the ~0.35us per-grid-step pipeline overhead."""
    if batch <= 256:
        return batch
    return min(max_block, _round_up((batch + 1) // 2, 128))


def _verify_canonical_index(index, batch, n_fields, check_index):
    """Kernels assume the canonical row-major field-grouped sparse layout:
    index == repeat(arange(batch), n_fields) (one value per (sample, field))."""
    if not check_index:
        return
    try:
        idx = np.asarray(index)
    except Exception as exc:                  # traced under jit -> cannot verify
        raise NotImplementedError(
            "index is traced and cannot be verified; this Pallas DeepFM kernel "
            "only supports index == repeat(arange(batch), n_fields). Pass "
            "check_index=False only if you can guarantee that layout.") from exc
    expected = np.repeat(np.arange(batch), n_fields)
    if idx.shape != expected.shape or not np.array_equal(idx, expected):
        raise NotImplementedError(
            "deepfm_forward requires index == repeat(arange(batch), n_fields)")


def deepfm_forward(batch_size, index, feats, values, params, n_fields, *,
                   force_slab=False, check_index=True, max_block=2048):
    """JAX/Pallas equivalent of DeepFM.forward. Returns (1, batch_size) float32."""
    bias, weights, embedding, w1, b1, w2, b2 = params
    B = int(batch_size)
    F = int(n_fields)
    V, K = embedding.shape
    H = w1.shape[1]
    Kp = _round_up(K, 8)                      # keep per-field slices sublane-aligned
    assert w1.shape[0] == F * K
    assert feats.shape[0] == B * F and values.shape[0] == B * F

    _verify_canonical_index(index, B, F, check_index)

    feats2d = feats.astype(jnp.int32).reshape(B, F)
    vals2d = values.astype(jnp.float32).reshape(B, F)

    # First FC layer, transposed and re-indexed for the K -> Kp padding.
    w1p = w1.astype(jnp.float32).reshape(F, K, H)
    if Kp != K:
        w1p = jnp.pad(w1p, ((0, 0), (0, Kp - K), (0, 0)))
    w1t = w1p.reshape(F * Kp, H).T                                    # (H, F*Kp)
    w2c = w2.astype(jnp.float32).reshape(H, 1)
    scal = jnp.stack([bias.reshape(()), b1.reshape(()), b2.reshape(())]
                     ).astype(jnp.float32)                            # (3,) -> SMEM

    block_b = _choose_block(B, max_block)
    grid = (pl.cdiv(B, block_b),)             # ragged edge handled by the pipeline
    out_shape = jax.ShapeDtypeStruct((1, B), jnp.float32)
    out_spec = pl.BlockSpec((1, block_b), lambda i: (0, i))
    smem_spec = pl.BlockSpec(memory_space=pltpu.MemorySpace.SMEM)
    cparams = pltpu.CompilerParams(dimension_semantics=("parallel",))

    use_gather = (V <= 64) and not force_slab
    if use_gather:
        # ---- small vocab: gather inside the kernel (one-hot MXU matmul) -----
        parts = [embedding.astype(jnp.float32).T]                     # (K, V)
        if Kp != K:
            parts.append(jnp.zeros((Kp - K, V), jnp.float32))
        parts.append(weights.astype(jnp.float32).T)                   # (1, V)
        tableT = jnp.concatenate(parts, axis=0)                       # (Kp+1, V)
        featsT = feats2d.T                                            # (F, B)
        valsT = vals2d.T                                              # (F, B)
        return pl.pallas_call(
            deepfm_gather_kernel,
            out_shape=out_shape,
            grid=grid,
            in_specs=[
                pl.BlockSpec((F, block_b), lambda i: (0, i)),         # featsT
                pl.BlockSpec((F, block_b), lambda i: (0, i)),         # valsT
                pl.BlockSpec((Kp + 1, V), lambda i: (0, 0)),          # emb|w table
                pl.BlockSpec((H, F * Kp), lambda i: (0, 0)),          # w1t
                pl.BlockSpec((H, 1), lambda i: (0, 0)),               # w2
                smem_spec,                                            # [bias,b1,b2]
            ],
            out_specs=out_spec,
            scratch_shapes=[
                pltpu.VMEM((V, block_b), jnp.float32),                # one-hot stage
                pltpu.VMEM((F * Kp, block_b), jnp.float32),           # raw emb slab
            ],
            compiler_params=cparams,
        )(featsT, valsT, tableT, w1t, w2c, scal)

    # ---- large vocab: XLA-side gather into a lane-dense bf16 slab -----------
    # TODO(synk): the (B, F*Kp) -> (F*Kp, B) transpose below is still one
    # XLA-side copy of the dominant tensor; folding it into the kernel (XLU
    # transpose of (Bt, F*Kp) blocks) is the next HBM-traffic win.
    wfeat = weights.astype(jnp.float32)[feats2d.reshape(-1), 0].reshape(B, F)
    vw = jnp.concatenate([vals2d.T, wfeat.T], axis=0)                 # (2F, B) f32
    emb_g = embedding.astype(jnp.bfloat16)[feats2d.reshape(-1)].reshape(B, F, K)
    if Kp != K:
        emb_g = jnp.pad(emb_g, ((0, 0), (0, 0), (0, Kp - K)))
    embT = emb_g.reshape(B, F * Kp).T                                 # (F*Kp, B) bf16
    return pl.pallas_call(
        deepfm_slab_kernel,
        out_shape=out_shape,
        grid=grid,
        in_specs=[
            pl.BlockSpec((2 * F, block_b), lambda i: (0, i)),         # values|w[feats]
            pl.BlockSpec((F * Kp, block_b), lambda i: (0, i)),        # bf16 emb slab
            pl.BlockSpec((H, F * Kp), lambda i: (0, 0)),              # w1t
            pl.BlockSpec((H, 1), lambda i: (0, 0)),                   # w2
            smem_spec,                                                # [bias,b1,b2]
        ],
        out_specs=out_spec,
        scratch_shapes=[pltpu.VMEM((F * Kp, block_b), jnp.float32)],
        compiler_params=cparams,
    )(vw, embT, w1t, w2c, scal)


# --------------------------------------------------------------------------- #
# Pure-JAX reference and test harness
# --------------------------------------------------------------------------- #
def deepfm_reference(batch_size, index, feats, values, params):
    """Pure-JAX float32 reference mirroring the PyTorch module."""
    bias, weights, embedding, w1, b1, w2, b2 = params
    wfeat = weights[feats, 0]
    emb = embedding[feats]

    first = jnp.zeros((batch_size,), jnp.float32).at[index].add(wfeat * values) + bias[0, 0]

    ev = emb * values[:, None]
    t1 = jnp.zeros((batch_size, emb.shape[1]), jnp.float32).at[index].add(ev) ** 2
    t2 = jnp.zeros((batch_size, emb.shape[1]), jnp.float32).at[index].add(
        (emb ** 2) * (values ** 2)[:, None])
    second = 0.5 * jnp.sum(t1 - t2, axis=1)

    h = emb.reshape(batch_size, -1)
    h = jnp.maximum(h @ w1 + b1[0, 0], 0.0)
    h = jnp.maximum(h @ w2 + b2[0, 0], 0.0)
    higher = h.reshape(-1)

    return jax.nn.sigmoid(first + second + higher).reshape(1, batch_size)


def xavier_uniform(key, shape):
    fan_in, fan_out = shape
    limit = (6.0 / (fan_in + fan_out)) ** 0.5
    return jax.random.uniform(key, shape, jnp.float32, -limit, limit)


if __name__ == "__main__":
    # Module hyper-parameters (small, consistent with DeepFM.__init__/forward).
    input_dim = 32
    n_fields = 8
    embedding_dim = 8
    fc_dims = [32, 1]

    key = jax.random.PRNGKey(0)
    k_w, k_e, k_w1, k_b1, k_w2, k_b2, k_f, k_v = jax.random.split(key, 8)

    # Parameters that feed MXU matmuls are rounded to bf16-representable f32 so
    # the correctness checks are independent of the platform's default f32
    # matmul precision (the kernels themselves compute/accumulate in f32).
    r16 = lambda a: a.astype(jnp.bfloat16).astype(jnp.float32)
    bias = jnp.zeros((1, 1), jnp.float32)
    weights = r16(xavier_uniform(k_w, (input_dim, 1)))
    embedding = r16(xavier_uniform(k_e, (input_dim, embedding_dim)))
    dim = n_fields * embedding_dim
    w1 = r16(xavier_uniform(k_w1, (dim, fc_dims[0])))
    b1 = jax.random.normal(k_b1, (1, 1), jnp.float32)
    w2 = xavier_uniform(k_w2, (fc_dims[0], fc_dims[1]))
    b2 = jax.random.normal(k_b2, (1, 1), jnp.float32)
    params = (bias, weights, embedding, w1, b1, w2, b2)

    def make_batch(batch, kf, kv):
        n = batch * n_fields
        idx = jnp.repeat(jnp.arange(batch, dtype=jnp.int32), n_fields)
        f = jax.random.randint(kf, (n,), 0, input_dim, jnp.int32)
        v = jax.random.uniform(kv, (n,), jnp.float32)
        return idx, f, v

    def check(batch, out, ref):
        assert out.shape == (1, batch), out.shape
        assert jnp.allclose(out, ref, atol=3e-5, rtol=3e-5), (out, ref)

    # 1) small batch, single block, in-kernel one-hot gather path.
    idx, f, v = make_batch(8, k_f, k_v)
    out = jax.block_until_ready(deepfm_forward(8, idx, f, v, params, n_fields))
    check(8, out, deepfm_reference(8, idx, f, v, params))

    # 2) multi-block grid (two "parallel" steps + ragged edge block), gather path.
    kf2, kv2 = jax.random.split(k_f)
    idx, f, v = make_batch(300, kf2, kv2)
    out = jax.block_until_ready(deepfm_forward(300, idx, f, v, params, n_fields))
    check(300, out, deepfm_reference(300, idx, f, v, params))

    # 3) large-vocabulary slab path (forced): lane-dense bf16 embedding slab.
    kf3, kv3 = jax.random.split(k_v)
    idx, f, v = make_batch(8, kf3, kv3)
    out = jax.block_until_ready(
        deepfm_forward(8, idx, f, v, params, n_fields, force_slab=True))
    check(8, out, deepfm_reference(8, idx, f, v, params))

    print("KERNEL_OK")
</pallas_src>

<mosaic_0001>
module attributes {stable_mosaic.version = 11 : i64} {
  func.func @deepfm_gather_kernel(%arg0: i32, %arg1: memref<8x8xi32, #tpu.memory_space<vmem>>, %arg2: memref<8x8xf32, #tpu.memory_space<vmem>>, %arg3: memref<9x32xf32, #tpu.memory_space<vmem>>, %arg4: memref<32x64xf32, #tpu.memory_space<vmem>>, %arg5: memref<32x1xf32, #tpu.memory_space<vmem>>, %arg6: memref<3xf32, #tpu.memory_space<smem>>, %arg7: memref<1x8xf32, #tpu.memory_space<vmem>>, %arg8: memref<32x8xf32, #tpu.memory_space<vmem>>, %arg9: memref<64x8xf32, #tpu.memory_space<vmem>>) attributes {dimension_semantics = [#tpu.dimension_semantics<parallel>], iteration_bounds = array<i64: 1>, scalar_prefetch = 0 : i64, scratch_operands = 2 : i64, tpu.core_type = #tpu.core_type<tc>, window_params = [{transform_indices = @transform_0, window_bounds = array<i64: 8, 8>}, {transform_indices = @transform_1, window_bounds = array<i64: 8, 8>}, {pipeline_mode = #tpu.pipeline_mode<synchronous>, transform_indices = @transform_2, window_bounds = array<i64: 9, 32>}, {pipeline_mode = #tpu.pipeline_mode<synchronous>, transform_indices = @transform_3, window_bounds = array<i64: 32, 64>}, {pipeline_mode = #tpu.pipeline_mode<synchronous>, transform_indices = @transform_4, window_bounds = array<i64: 32, 1>}, {transform_indices = @transform_5, window_bounds = array<i64: 3>}, {transform_indices = @transform_6, window_bounds = array<i64: 1, 8>}]} {
    %c0 = arith.constant 0 : index
    %0 = memref.load %arg6[%c0] : memref<3xf32, #tpu.memory_space<smem>>
    %c1 = arith.constant 1 : index
    %1 = memref.load %arg6[%c1] : memref<3xf32, #tpu.memory_space<smem>>
    %c2 = arith.constant 2 : index
    %2 = memref.load %arg6[%c2] : memref<3xf32, #tpu.memory_space<smem>>
    %3 = tpu.iota {dimensions = array<i32: 0>} : vector<32x1xi32>
    %cst = arith.constant 0.000000e+00 : f32
    %4 = vector.broadcast %cst : f32 to vector<8x8xf32>
    %cst_0 = arith.constant 0.000000e+00 : f32
    %5 = vector.broadcast %cst_0 : f32 to vector<1x8xf32>
    %cst_1 = arith.constant 0.000000e+00 : f32
    %6 = vector.broadcast %cst_1 : f32 to vector<1x8xf32>
    %c0_2 = arith.constant 0 : index
    %c0_3 = arith.constant 0 : index
    %7 = vector.load %arg1[%c0_2, %c0_3] : memref<8x8xi32, #tpu.memory_space<vmem>>, vector<1x8xi32>
    %c0_4 = arith.constant 0 : index
    %c0_5 = arith.constant 0 : index
    %8 = vector.load %arg2[%c0_4, %c0_5] : memref<8x8xf32, #tpu.memory_space<vmem>>, vector<1x8xf32>
    %9 = vector.broadcast %3 : vector<32x1xi32> to vector<32x8xi32>
    %10 = vector.broadcast %7 : vector<1x8xi32> to vector<32x8xi32>
    %11 = arith.cmpi eq, %9, %10 : vector<32x8xi32>
    %12 = arith.extui %11 : vector<32x8xi1> to vector<32x8xi32>
    %13 = arith.sitofp %12 : vector<32x8xi32> to vector<32x8xf32>
    %c0_6 = arith.constant 0 : index
    %c0_7 = arith.constant 0 : index
    %14 = vector.load %arg8[%c0_6, %c0_7] : memref<32x8xf32, #tpu.memory_space<vmem>>, vector<32x8xf32>
    tpu.vector_store %arg8[%c0_6, %c0_7], %13 {strides = array<i32>} : memref<32x8xf32, #tpu.memory_space<vmem>>, vector<32x8xf32>,
    %c0_8 = arith.constant 0 : index
    %c0_9 = arith.constant 0 : index
    %15 = vector.load %arg3[%c0_8, %c0_9] : memref<9x32xf32, #tpu.memory_space<vmem>>, vector<9x32xf32>
    %c0_10 = arith.constant 0 : index
    %c0_11 = arith.constant 0 : index
    %16 = vector.load %arg8[%c0_10, %c0_11] : memref<32x8xf32, #tpu.memory_space<vmem>>, vector<32x8xf32>
    %cst_12 = arith.constant dense<0.000000e+00> : vector<9x8xf32>
    %17 = tpu.matmul %15, %16, %cst_12 {dimension_numbers = #tpu.dot_dimension_numbers<[1], [0], [0], [1], [0, 0, 1, 1], [], []>} : vector<9x32xf32>, vector<32x8xf32>, vector<9x8xf32> -> vector<9x8xf32>
    %18 = vector.extract_strided_slice %17 {offsets = [0, 0], sizes = [8, 8], strides = [1, 1]} : vector<9x8xf32> to vector<8x8xf32>
    %c0_13 = arith.constant 0 : index
    %c0_14 = arith.constant 0 : index
    %19 = vector.load %arg9[%c0_13, %c0_14] : memref<64x8xf32, #tpu.memory_space<vmem>>, vector<8x8xf32>
    tpu.vector_store %arg9[%c0_13, %c0_14], %18 {strides = array<i32>} : memref<64x8xf32, #tpu.memory_space<vmem>>, vector<8x8xf32>,
    %20 = vector.broadcast %8 : vector<1x8xf32> to vector<8x8xf32>
    %21 = arith.mulf %18, %20 : vector<8x8xf32>
    %22 = vector.extract_strided_slice %17 {offsets = [8, 0], sizes = [1, 8], strides = [1, 1]} : vector<9x8xf32> to vector<1x8xf32>
    %23 = arith.mulf %22, %8 : vector<1x8xf32>
    %24 = arith.addf %6, %23 : vector<1x8xf32>
    %25 = arith.addf %4, %21 : vector<8x8xf32>
    %26 = arith.mulf %21, %21 : vector<8x8xf32>
    %cst_15 = arith.constant dense<0.000000e+00> : vector<8xf32>
    %27 = vector.multi_reduction <add>, %26, %cst_15 [0] : vector<8x8xf32> to vector<8xf32>
    %28 = vector.shape_cast %27 : vector<8xf32> to vector<1x8xf32>
    %29 = arith.addf %5, %28 : vector<1x8xf32>
    %c1_16 = arith.constant 1 : index
    %c0_17 = arith.constant 0 : index
    %30 = vector.load %arg1[%c1_16, %c0_17] : memref<8x8xi32, #tpu.memory_space<vmem>>, vector<1x8xi32>
    %c1_18 = arith.constant 1 : index
    %c0_19 = arith.constant 0 : index
    %31 = vector.load %arg2[%c1_18, %c0_19] : memref<8x8xf32, #tpu.memory_space<vmem>>, vector<1x8xf32>
    %32 = vector.broadcast %3 : vector<32x1xi32> to vector<32x8xi32>
    %33 = vector.broadcast %30 : vector<1x8xi32> to vector<32x8xi32>
    %34 = arith.cmpi eq, %32, %33 : vector<32x8xi32>
    %35 = arith.extui %34 : vector<32x8xi1> to vector<32x8xi32>
    %36 = arith.sitofp %35 : vector<32x8xi32> to vector<32x8xf32>
    %c0_20 = arith.constant 0 : index
    %c0_21 = arith.constant 0 : index
    %37 = vector.load %arg8[%c0_20, %c0_21] : memref<32x8xf32, #tpu.memory_space<vmem>>, vector<32x8xf32>
    tpu.vector_store %arg8[%c0_20, %c0_21], %36 {strides = array<i32>} : memref<32x8xf32, #tpu.memory_space<vmem>>, vector<32x8xf32>,
    %c0_22 = arith.constant 0 : index
    %c0_23 = arith.constant 0 : index
    %38 = vector.load %arg3[%c0_22, %c0_23] : memref<9x32xf32, #tpu.memory_space<vmem>>, vector<9x32xf32>
    %c0_24 = arith.constant 0 : index
    %c0_25 = arith.constant 0 : index
    %39 = vector.load %arg8[%c0_24, %c0_25] : memref<32x8xf32, #tpu.memory_space<vmem>>, vector<32x8xf32>
    %cst_26 = arith.constant dense<0.000000e+00> : vector<9x8xf32>
    %40 = tpu.matmul %38, %39, %cst_26 {dimension_numbers = #tpu.dot_dimension_numbers<[1], [0], [0], [1], [0, 0, 1, 1], [], []>} : vector<9x32xf32>, vector<32x8xf32>, vector<9x8xf32> -> vector<9x8xf32>
    %41 = vector.extract_strided_slice %40 {offsets = [0, 0], sizes = [8, 8], strides = [1, 1]} : vector<9x8xf32> to vector<8x8xf32>
    %c8 = arith.constant 8 : index
    %c0_27 = arith.constant 0 : index
    %42 = vector.load %arg9[%c8, %c0_27] : memref<64x8xf32, #tpu.memory_space<vmem>>, vector<8x8xf32>
    tpu.vector_store %arg9[%c8, %c0_27], %41 {strides = array<i32>} : memref<64x8xf32, #tpu.memory_space<vmem>>, vector<8x8xf32>,
    %43 = vector.broadcast %31 : vector<1x8xf32> to vector<8x8xf32>
    %44 = arith.mulf %41, %43 : vector<8x8xf32>
    %45 = vector.extract_strided_slice %40 {offsets = [8, 0], sizes = [1, 8], strides = [1, 1]} : vector<9x8xf32> to vector<1x8xf32>
    %46 = arith.mulf %45, %31 : vector<1x8xf32>
    %47 = arith.addf %24, %46 : vector<1x8xf32>
    %48 = arith.addf %25, %44 : vector<8x8xf32>
    %49 = arith.mulf %44, %44 : vector<8x8xf32>
    %cst_28 = arith.constant dense<0.000000e+00> : vector<8xf32>
    %50 = vector.multi_reduction <add>, %49, %cst_28 [0] : vector<8x8xf32> to vector<8xf32>
    %51 = vector.shape_cast %50 : vector<8xf32> to vector<1x8xf32>
    %52 = arith.addf %29, %51 : vector<1x8xf32>
    %c2_29 = arith.constant 2 : index
    %c0_30 = arith.constant 0 : index
    %53 = vector.load %arg1[%c2_29, %c0_30] : memref<8x8xi32, #tpu.memory_space<vmem>>, vector<1x8xi32>
    %c2_31 = arith.constant 2 : index
    %c0_32 = arith.constant 0 : index
    %54 = vector.load %arg2[%c2_31, %c0_32] : memref<8x8xf32, #tpu.memory_space<vmem>>, vector<1x8xf32>
    %55 = vector.broadcast %3 : vector<32x1xi32> to vector<32x8xi32>
    %56 = vector.broadcast %53 : vector<1x8xi32> to vector<32x8xi32>
    %57 = arith.cmpi eq, %55, %56 : vector<32x8xi32>
    %58 = arith.extui %57 : vector<32x8xi1> to vector<32x8xi32>
    %59 = arith.sitofp %58 : vector<32x8xi32> to vector<32x8xf32>
    %c0_33 = arith.constant 0 : index
    %c0_34 = arith.constant 0 : index
    %60 = vector.load %arg8[%c0_33, %c0_34] : memref<32x8xf32, #tpu.memory_space<vmem>>, vector<32x8xf32>
    tpu.vector_store %arg8[%c0_33, %c0_34], %59 {strides = array<i32>} : memref<32x8xf32, #tpu.memory_space<vmem>>, vector<32x8xf32>,
    %c0_35 = arith.constant 0 : index
    %c0_36 = arith.constant 0 : index
    %61 = vector.load %arg3[%c0_35, %c0_36] : memref<9x32xf32, #tpu.memory_space<vmem>>, vector<9x32xf32>
    %c0_37 = arith.constant 0 : index
    %c0_38 = arith.constant 0 : index
    %62 = vector.load %arg8[%c0_37, %c0_38] : memref<32x8xf32, #tpu.memory_space<vmem>>, vector<32x8xf32>
    %cst_39 = arith.constant dense<0.000000e+00> : vector<9x8xf32>
    %63 = tpu.matmul %61, %62, %cst_39 {dimension_numbers = #tpu.dot_dimension_numbers<[1], [0], [0], [1], [0, 0, 1, 1], [], []>} : vector<9x32xf32>, vector<32x8xf32>, vector<9x8xf32> -> vector<9x8xf32>
    %64 = vector.extract_strided_slice %63 {offsets = [0, 0], sizes = [8, 8], strides = [1, 1]} : vector<9x8xf32> to vector<8x8xf32>
    %c16 = arith.constant 16 : index
    %c0_40 = arith.constant 0 : index
    %65 = vector.load %arg9[%c16, %c0_40] : memref<64x8xf32, #tpu.memory_space<vmem>>, vector<8x8xf32>
    tpu.vector_store %arg9[%c16, %c0_40], %64 {strides = array<i32>} : memref<64x8xf32, #tpu.memory_space<vmem>>, vector<8x8xf32>,
    %66 = vector.broadcast %54 : vector<1x8xf32> to vector<8x8xf32>
    %67 = arith.mulf %64, %66 : vector<8x8xf32>
    %68 = vector.extract_strided_slice %63 {offsets = [8, 0], sizes = [1, 8], strides = [1, 1]} : vector<9x8xf32> to vector<1x8xf32>
    %69 = arith.mulf %68, %54 : vector<1x8xf32>
    %70 = arith.addf %47, %69 : vector<1x8xf32>
    %71 = arith.addf %48, %67 : vector<8x8xf32>
    %72 = arith.mulf %67, %67 : vector<8x8xf32>
    %cst_41 = arith.constant dense<0.000000e+00> : vector<8xf32>
    %73 = vector.multi_reduction <add>, %72, %cst_41 [0] : vector<8x8xf32> to vector<8xf32>
    %74 = vector.shape_cast %73 : vector<8xf32> to vector<1x8xf32>
    %75 = arith.addf %52, %74 : vector<1x8xf32>
    %c3 = arith.constant 3 : index
    %c0_42 = arith.constant 0 : index
    %76 = vector.load %arg1[%c3, %c0_42] : memref<8x8xi32, #tpu.memory_space<vmem>>, vector<1x8xi32>
    %c3_43 = arith.constant 3 : index
    %c0_44 = arith.constant 0 : index
    %77 = vector.load %arg2[%c3_43, %c0_44] : memref<8x8xf32, #tpu.memory_space<vmem>>, vector<1x8xf32>
    %78 = vector.broadcast %3 : vector<32x1xi32> to vector<32x8xi32>
    %79 = vector.broadcast %76 : vector<1x8xi32> to vector<32x8xi32>
    %80 = arith.cmpi eq, %78, %79 : vector<32x8xi32>
    %81 = arith.extui %80 : vector<32x8xi1> to vector<32x8xi32>
    %82 = arith.sitofp %81 : vector<32x8xi32> to vector<32x8xf32>
    %c0_45 = arith.constant 0 : index
    %c0_46 = arith.constant 0 : index
    %83 = vector.load %arg8[%c0_45, %c0_46] : memref<32x8xf32, #tpu.memory_space<vmem>>, vector<32x8xf32>
    tpu.vector_store %arg8[%c0_45, %c0_46], %82 {strides = array<i32>} : memref<32x8xf32, #tpu.memory_space<vmem>>, vector<32x8xf32>,
    %c0_47 = arith.constant 0 : index
    %c0_48 = arith.constant 0 : index
    %84 = vector.load %arg3[%c0_47, %c0_48] : memref<9x32xf32, #tpu.memory_space<vmem>>, vector<9x32xf32>
    %c0_49 = arith.constant 0 : index
    %c0_50 = arith.constant 0 : index
    %85 = vector.load %arg8[%c0_49, %c0_50] : memref<32x8xf32, #tpu.memory_space<vmem>>, vector<32x8xf32>
    %cst_51 = arith.constant dense<0.000000e+00> : vector<9x8xf32>
    %86 = tpu.matmul %84, %85, %cst_51 {dimension_numbers = #tpu.dot_dimension_numbers<[1], [0], [0], [1], [0, 0, 1, 1], [], []>} : vector<9x32xf32>, vector<32x8xf32>, vector<9x8xf32> -> vector<9x8xf32>
    %87 = vector.extract_strided_slice %86 {offsets = [0, 0], sizes = [8, 8], strides = [1, 1]} : vector<9x8xf32> to vector<8x8xf32>
    %c24 = arith.constant 24 : index
    %c0_52 = arith.constant 0 : index
    %88 = vector.load %arg9[%c24, %c0_52] : memref<64x8xf32, #tpu.memory_space<vmem>>, vector<8x8xf32>
    tpu.vector_store %arg9[%c24, %c0_52], %87 {strides = array<i32>} : memref<64x8xf32, #tpu.memory_space<vmem>>, vector<8x8xf32>,
    %89 = vector.broadcast %77 : vector<1x8xf32> to vector<8x8xf32>
    %90 = arith.mulf %87, %89 : vector<8x8xf32>
    %91 = vector.extract_strided_slice %86 {offsets = [8, 0], sizes = [1, 8], strides = [1, 1]} : vector<9x8xf32> to vector<1x8xf32>
    %92 = arith.mulf %91, %77 : vector<1x8xf32>
    %93 = arith.addf %70, %92 : vector<1x8xf32>
    %94 = arith.addf %71, %90 : vector<8x8xf32>
    %95 = arith.mulf %90, %90 : vector<8x8xf32>
    %cst_53 = arith.constant dense<0.000000e+00> : vector<8xf32>
    %96 = vector.multi_reduction <add>, %95, %cst_53 [0] : vector<8x8xf32> to vector<8xf32>
    %97 = vector.shape_cast %96 : vector<8xf32> to vector<1x8xf32>
    %98 = arith.addf %75, %97 : vector<1x8xf32>
    %c4 = arith.constant 4 : index
    %c0_54 = arith.constant 0 : index
    %99 = vector.load %arg1[%c4, %c0_54] : memref<8x8xi32, #tpu.memory_space<vmem>>, vector<1x8xi32>
    %c4_55 = arith.constant 4 : index
    %c0_56 = arith.constant 0 : index
    %100 = vector.load %arg2[%c4_55, %c0_56] : memref<8x8xf32, #tpu.memory_space<vmem>>, vector<1x8xf32>
    %101 = vector.broadcast %3 : vector<32x1xi32> to vector<32x8xi32>
    %102 = vector.broadcast %99 : vector<1x8xi32> to vector<32x8xi32>
    %103 = arith.cmpi eq, %101, %102 : vector<32x8xi32>
    %104 = arith.extui %103 : vector<32x8xi1> to vector<32x8xi32>
    %105 = arith.sitofp %104 : vector<32x8xi32> to vector<32x8xf32>
    %c0_57 = arith.constant 0 : index
    %c0_58 = arith.constant 0 : index
    %106 = vector.load %arg8[%c0_57, %c0_58] : memref<32x8xf32, #tpu.memory_space<vmem>>, vector<32x8xf32>
    tpu.vector_store %arg8[%c0_57, %c0_58], %105 {strides = array<i32>} : memref<32x8xf32, #tpu.memory_space<vmem>>, vector<32x8xf32>,
    %c0_59 = arith.constant 0 : index
    %c0_60 = arith.constant 0 : index
    %107 = vector.load %arg3[%c0_59, %c0_60] : memref<9x32xf32, #tpu.memory_space<vmem>>, vector<9x32xf32>
    %c0_61 = arith.constant 0 : index
    %c0_62 = arith.constant 0 : index
    %108 = vector.load %arg8[%c0_61, %c0_62] : memref<32x8xf32, #tpu.memory_space<vmem>>, vector<32x8xf32>
    %cst_63 = arith.constant dense<0.000000e+00> : vector<9x8xf32>
    %109 = tpu.matmul %107, %108, %cst_63 {dimension_numbers = #tpu.dot_dimension_numbers<[1], [0], [0], [1], [0, 0, 1, 1], [], []>} : vector<9x32xf32>, vector<32x8xf32>, vector<9x8xf32> -> vector<9x8xf32>
    %110 = vector.extract_strided_slice %109 {offsets = [0, 0], sizes = [8, 8], strides = [1, 1]} : vector<9x8xf32> to vector<8x8xf32>
    %c32 = arith.constant 32 : index
    %c0_64 = arith.constant 0 : index
    %111 = vector.load %arg9[%c32, %c0_64] : memref<64x8xf32, #tpu.memory_space<vmem>>, vector<8x8xf32>
    tpu.vector_store %arg9[%c32, %c0_64], %110 {strides = array<i32>} : memref<64x8xf32, #tpu.memory_space<vmem>>, vector<8x8xf32>,
    %112 = vector.broadcast %100 : vector<1x8xf32> to vector<8x8xf32>
    %113 = arith.mulf %110, %112 : vector<8x8xf32>
    %114 = vector.extract_strided_slice %109 {offsets = [8, 0], sizes = [1, 8], strides = [1, 1]} : vector<9x8xf32> to vector<1x8xf32>
    %115 = arith.mulf %114, %100 : vector<1x8xf32>
    %116 = arith.addf %93, %115 : vector<1x8xf32>
    %117 = arith.addf %94, %113 : vector<8x8xf32>
    %118 = arith.mulf %113, %113 : vector<8x8xf32>
    %cst_65 = arith.constant dense<0.000000e+00> : vector<8xf32>
    %119 = vector.multi_reduction <add>, %118, %cst_65 [0] : vector<8x8xf32> to vector<8xf32>
    %120 = vector.shape_cast %119 : vector<8xf32> to vector<1x8xf32>
    %121 = arith.addf %98, %120 : vector<1x8xf32>
    %c5 = arith.constant 5 : index
    %c0_66 = arith.constant 0 : index
    %122 = vector.load %arg1[%c5, %c0_66] : memref<8x8xi32, #tpu.memory_space<vmem>>, vector<1x8xi32>
    %c5_67 = arith.constant 5 : index
    %c0_68 = arith.constant 0 : index
    %123 = vector.load %arg2[%c5_67, %c0_68] : memref<8x8xf32, #tpu.memory_space<vmem>>, vector<1x8xf32>
    %124 = vector.broadcast %3 : vector<32x1xi32> to vector<32x8xi32>
    %125 = vector.broadcast %122 : vector<1x8xi32> to vector<32x8xi32>
    %126 = arith.cmpi eq, %124, %125 : vector<32x8xi32>
    %127 = arith.extui %126 : vector<32x8xi1> to vector<32x8xi32>
    %128 = arith.sitofp %127 : vector<32x8xi32> to vector<32x8xf32>
    %c0_69 = arith.constant 0 : index
    %c0_70 = arith.constant 0 : index
    %129 = vector.load %arg8[%c0_69, %c0_70] : memref<32x8xf32, #tpu.memory_space<vmem>>, vector<32x8xf32>
    tpu.vector_store %arg8[%c0_69, %c0_70], %128 {strides = array<i32>} : memref<32x8xf32, #tpu.memory_space<vmem>>, vector<32x8xf32>,
    %c0_71 = arith.constant 0 : index
    %c0_72 = arith.constant 0 : index
    %130 = vector.load %arg3[%c0_71, %c0_72] : memref<9x32xf32, #tpu.memory_space<vmem>>, vector<9x32xf32>
    %c0_73 = arith.constant 0 : index
    %c0_74 = arith.constant 0 : index
    %131 = vector.load %arg8[%c0_73, %c0_74] : memref<32x8xf32, #tpu.memory_space<vmem>>, vector<32x8xf32>
    %cst_75 = arith.constant dense<0.000000e+00> : vector<9x8xf32>
    %132 = tpu.matmul %130, %131, %cst_75 {dimension_numbers = #tpu.dot_dimension_numbers<[1], [0], [0], [1], [0, 0, 1, 1], [], []>} : vector<9x32xf32>, vector<32x8xf32>, vector<9x8xf32> -> vector<9x8xf32>
    %133 = vector.extract_strided_slice %132 {offsets = [0, 0], sizes = [8, 8], strides = [1, 1]} : vector<9x8xf32> to vector<8x8xf32>
    %c40 = arith.constant 40 : index
    %c0_76 = arith.constant 0 : index
    %134 = vector.load %arg9[%c40, %c0_76] : memref<64x8xf32, #tpu.memory_space<vmem>>, vector<8x8xf32>
    tpu.vector_store %arg9[%c40, %c0_76], %133 {strides = array<i32>} : memref<64x8xf32, #tpu.memory_space<vmem>>, vector<8x8xf32>,
    %135 = vector.broadcast %123 : vector<1x8xf32> to vector<8x8xf32>
    %136 = arith.mulf %133, %135 : vector<8x8xf32>
    %137 = vector.extract_strided_slice %132 {offsets = [8, 0], sizes = [1, 8], strides = [1, 1]} : vector<9x8xf32> to vector<1x8xf32>
    %138 = arith.mulf %137, %123 : vector<1x8xf32>
    %139 = arith.addf %116, %138 : vector<1x8xf32>
    %140 = arith.addf %117, %136 : vector<8x8xf32>
    %141 = arith.mulf %136, %136 : vector<8x8xf32>
    %cst_77 = arith.constant dense<0.000000e+00> : vector<8xf32>
    %142 = vector.multi_reduction <add>, %141, %cst_77 [0] : vector<8x8xf32> to vector<8xf32>
    %143 = vector.shape_cast %142 : vector<8xf32> to vector<1x8xf32>
    %144 = arith.addf %121, %143 : vector<1x8xf32>
    %c6 = arith.constant 6 : index
    %c0_78 = arith.constant 0 : index
    %145 = vector.load %arg1[%c6, %c0_78] : memref<8x8xi32, #tpu.memory_space<vmem>>, vector<1x8xi32>
    %c6_79 = arith.constant 6 : index
    %c0_80 = arith.constant 0 : index
    %146 = vector.load %arg2[%c6_79, %c0_80] : memref<8x8xf32, #tpu.memory_space<vmem>>, vector<1x8xf32>
    %147 = vector.broadcast %3 : vector<32x1xi32> to vector<32x8xi32>
    %148 = vector.broadcast %145 : vector<1x8xi32> to vector<32x8xi32>
    %149 = arith.cmpi eq, %147, %148 : vector<32x8xi32>
    %150 = arith.extui %149 : vector<32x8xi1> to vector<32x8xi32>
    %151 = arith.sitofp %150 : vector<32x8xi32> to vector<32x8xf32>
    %c0_81 = arith.constant 0 : index
    %c0_82 = arith.constant 0 : index
    %152 = vector.load %arg8[%c0_81, %c0_82] : memref<32x8xf32, #tpu.memory_space<vmem>>, vector<32x8xf32>
    tpu.vector_store %arg8[%c0_81, %c0_82], %151 {strides = array<i32>} : memref<32x8xf32, #tpu.memory_space<vmem>>, vector<32x8xf32>,
    %c0_83 = arith.constant 0 : index
    %c0_84 = arith.constant 0 : index
    %153 = vector.load %arg3[%c0_83, %c0_84] : memref<9x32xf32, #tpu.memory_space<vmem>>, vector<9x32xf32>
    %c0_85 = arith.constant 0 : index
    %c0_86 = arith.constant 0 : index
    %154 = vector.load %arg8[%c0_85, %c0_86] : memref<32x8xf32, #tpu.memory_space<vmem>>, vector<32x8xf32>
    %cst_87 = arith.constant dense<0.000000e+00> : vector<9x8xf32>
    %155 = tpu.matmul %153, %154, %cst_87 {dimension_numbers = #tpu.dot_dimension_numbers<[1], [0], [0], [1], [0, 0, 1, 1], [], []>} : vector<9x32xf32>, vector<32x8xf32>, vector<9x8xf32> -> vector<9x8xf32>
    %156 = vector.extract_strided_slice %155 {offsets = [0, 0], sizes = [8, 8], strides = [1, 1]} : vector<9x8xf32> to vector<8x8xf32>
    %c48 = arith.constant 48 : index
    %c0_88 = arith.constant 0 : index
    %157 = vector.load %arg9[%c48, %c0_88] : memref<64x8xf32, #tpu.memory_space<vmem>>, vector<8x8xf32>
    tpu.vector_store %arg9[%c48, %c0_88], %156 {strides = array<i32>} : memref<64x8xf32, #tpu.memory_space<vmem>>, vector<8x8xf32>,
    %158 = vector.broadcast %146 : vector<1x8xf32> to vector<8x8xf32>
    %159 = arith.mulf %156, %158 : vector<8x8xf32>
    %160 = vector.extract_strided_slice %155 {offsets = [8, 0], sizes = [1, 8], strides = [1, 1]} : vector<9x8xf32> to vector<1x8xf32>
    %161 = arith.mulf %160, %146 : vector<1x8xf32>
    %162 = arith.addf %139, %161 : vector<1x8xf32>
    %163 = arith.addf %140, %159 : vector<8x8xf32>
    %164 = arith.mulf %159, %159 : vector<8x8xf32>
    %cst_89 = arith.constant dense<0.000000e+00> : vector<8xf32>
    %165 = vector.multi_reduction <add>, %164, %cst_89 [0] : vector<8x8xf32> to vector<8xf32>
    %166 = vector.shape_cast %165 : vector<8xf32> to vector<1x8xf32>
    %167 = arith.addf %144, %166 : vector<1x8xf32>
    %c7 = arith.constant 7 : index
    %c0_90 = arith.constant 0 : index
    %168 = vector.load %arg1[%c7, %c0_90] : memref<8x8xi32, #tpu.memory_space<vmem>>, vector<1x8xi32>
    %c7_91 = arith.constant 7 : index
    %c0_92 = arith.constant 0 : index
    %169 = vector.load %arg2[%c7_91, %c0_92] : memref<8x8xf32, #tpu.memory_space<vmem>>, vector<1x8xf32>
    %170 = vector.broadcast %3 : vector<32x1xi32> to vector<32x8xi32>
    %171 = vector.broadcast %168 : vector<1x8xi32> to vector<32x8xi32>
    %172 = arith.cmpi eq, %170, %171 : vector<32x8xi32>
    %173 = arith.extui %172 : vector<32x8xi1> to vector<32x8xi32>
    %174 = arith.sitofp %173 : vector<32x8xi32> to vector<32x8xf32>
    %c0_93 = arith.constant 0 : index
    %c0_94 = arith.constant 0 : index
    %175 = vector.load %arg8[%c0_93, %c0_94] : memref<32x8xf32, #tpu.memory_space<vmem>>, vector<32x8xf32>
    tpu.vector_store %arg8[%c0_93, %c0_94], %174 {strides = array<i32>} : memref<32x8xf32, #tpu.memory_space<vmem>>, vector<32x8xf32>,
    %c0_95 = arith.constant 0 : index
    %c0_96 = arith.constant 0 : index
    %176 = vector.load %arg3[%c0_95, %c0_96] : memref<9x32xf32, #tpu.memory_space<vmem>>, vector<9x32xf32>
    %c0_97 = arith.constant 0 : index
    %c0_98 = arith.constant 0 : index
    %177 = vector.load %arg8[%c0_97, %c0_98] : memref<32x8xf32, #tpu.memory_space<vmem>>, vector<32x8xf32>
    %cst_99 = arith.constant dense<0.000000e+00> : vector<9x8xf32>
    %178 = tpu.matmul %176, %177, %cst_99 {dimension_numbers = #tpu.dot_dimension_numbers<[1], [0], [0], [1], [0, 0, 1, 1], [], []>} : vector<9x32xf32>, vector<32x8xf32>, vector<9x8xf32> -> vector<9x8xf32>
    %179 = vector.extract_strided_slice %178 {offsets = [0, 0], sizes = [8, 8], strides = [1, 1]} : vector<9x8xf32> to vector<8x8xf32>
    %c56 = arith.constant 56 : index
    %c0_100 = arith.constant 0 : index
    %180 = vector.load %arg9[%c56, %c0_100] : memref<64x8xf32, #tpu.memory_space<vmem>>, vector<8x8xf32>
    tpu.vector_store %arg9[%c56, %c0_100], %179 {strides = array<i32>} : memref<64x8xf32, #tpu.memory_space<vmem>>, vector<8x8xf32>,
    %181 = vector.broadcast %169 : vector<1x8xf32> to vector<8x8xf32>
    %182 = arith.mulf %179, %181 : vector<8x8xf32>
    %183 = vector.extract_strided_slice %178 {offsets = [8, 0], sizes = [1, 8], strides = [1, 1]} : vector<9x8xf32> to vector<1x8xf32>
    %184 = arith.mulf %183, %169 : vector<1x8xf32>
    %185 = arith.addf %162, %184 : vector<1x8xf32>
    %186 = arith.addf %163, %182 : vector<8x8xf32>
    %187 = arith.mulf %182, %182 : vector<8x8xf32>
    %cst_101 = arith.constant dense<0.000000e+00> : vector<8xf32>
    %188 = vector.multi_reduction <add>, %187, %cst_101 [0] : vector<8x8xf32> to vector<8xf32>
    %189 = vector.shape_cast %188 : vector<8xf32> to vector<1x8xf32>
    %190 = arith.addf %167, %189 : vector<1x8xf32>
    %191 = vector.broadcast %0 : f32 to vector<1x8xf32>
    %192 = arith.addf %185, %191 : vector<1x8xf32>
    %193 = arith.mulf %186, %186 : vector<8x8xf32>
    %cst_102 = arith.constant dense<0.000000e+00> : vector<8xf32>
    %194 = vector.multi_reduction <add>, %193, %cst_102 [0] : vector<8x8xf32> to vector<8xf32>
    %195 = vector.shape_cast %194 : vector<8xf32> to vector<1x8xf32>
    %196 = arith.subf %195, %190 : vector<1x8xf32>
    %cst_103 = arith.constant 5.000000e-01 : f32
    %197 = vector.broadcast %cst_103 : f32 to vector<1x8xf32>
    %198 = arith.mulf %197, %196 : vector<1x8xf32>
    %c0_104 = arith.constant 0 : index
    %c0_105 = arith.constant 0 : index
    %199 = vector.load %arg4[%c0_104, %c0_105] : memref<32x64xf32, #tpu.memory_space<vmem>>, vector<32x64xf32>
    %c0_106 = arith.constant 0 : index
    %c0_107 = arith.constant 0 : index
    %200 = vector.load %arg9[%c0_106, %c0_107] : memref<64x8xf32, #tpu.memory_space<vmem>>, vector<64x8xf32>
    %cst_108 = arith.constant dense<0.000000e+00> : vector<32x8xf32>
    %201 = tpu.matmul %199, %200, %cst_108 {dimension_numbers = #tpu.dot_dimension_numbers<[1], [0], [0], [1], [0, 0, 1, 1], [], []>} : vector<32x64xf32>, vector<64x8xf32>, vector<32x8xf32> -> vector<32x8xf32>
    %202 = vector.broadcast %1 : f32 to vector<32x8xf32>
    %203 = arith.addf %201, %202 : vector<32x8xf32>
    %cst_109 = arith.constant 0.000000e+00 : f32
    %204 = vector.broadcast %cst_109 : f32 to vector<32x8xf32>
    %205 = arith.maximumf %203, %204 : vector<32x8xf32>
    %c0_110 = arith.constant 0 : index
    %c0_111 = arith.constant 0 : index
    %206 = vector.load %arg5[%c0_110, %c0_111] : memref<32x1xf32, #tpu.memory_space<vmem>>, vector<32x1xf32>
    %207 = vector.broadcast %206 : vector<32x1xf32> to vector<32x8xf32>
    %208 = arith.mulf %205, %207 : vector<32x8xf32>
    %cst_112 = arith.constant dense<0.000000e+00> : vector<8xf32>
    %209 = vector.multi_reduction <add>, %208, %cst_112 [0] : vector<32x8xf32> to vector<8xf32>
    %210 = vector.shape_cast %209 : vector<8xf32> to vector<1x8xf32>
    %211 = vector.broadcast %2 : f32 to vector<1x8xf32>
    %212 = arith.addf %210, %211 : vector<1x8xf32>
    %cst_113 = arith.constant 0.000000e+00 : f32
    %213 = vector.broadcast %cst_113 : f32 to vector<1x8xf32>
    %214 = arith.maximumf %212, %213 : vector<1x8xf32>
    %215 = arith.addf %192, %198 : vector<1x8xf32>
    %216 = arith.addf %215, %214 : vector<1x8xf32>
    %217 = arith.negf %216 : vector<1x8xf32>
    %218 = math.exp %217 : vector<1x8xf32>
    %cst_114 = arith.constant 1.000000e+00 : f32
    %219 = vector.broadcast %cst_114 : f32 to vector<1x8xf32>
    %220 = arith.addf %219, %218 : vector<1x8xf32>
    %221 = arith.divf %219, %220 : vector<1x8xf32>
    %c0_115 = arith.constant 0 : index
    %c0_116 = arith.constant 0 : index
    %222 = vector.load %arg7[%c0_115, %c0_116] : memref<1x8xf32, #tpu.memory_space<vmem>>, vector<1x8xf32>
    tpu.vector_store %arg7[%c0_115, %c0_116], %221 {strides = array<i32>} : memref<1x8xf32, #tpu.memory_space<vmem>>, vector<1x8xf32>,
    return
  }
  func.func @transform_0(%arg0: i32) -> (i32, i32) {
    %c0_i32 = arith.constant 0 : i32
    %c0_i32_0 = arith.constant 0 : i32
    return %c0_i32, %arg0 : i32, i32
  }
  func.func @transform_1(%arg0: i32) -> (i32, i32) {
    %c0_i32 = arith.constant 0 : i32
    %c0_i32_0 = arith.constant 0 : i32
    return %c0_i32, %arg0 : i32, i32
  }
  func.func @transform_2(%arg0: i32) -> (i32, i32) {
    %c0_i32 = arith.constant 0 : i32
    %c0_i32_0 = arith.constant 0 : i32
    %c0_i32_1 = arith.constant 0 : i32
    return %c0_i32, %c0_i32_0 : i32, i32
  }
  func.func @transform_3(%arg0: i32) -> (i32, i32) {
    %c0_i32 = arith.constant 0 : i32
    %c0_i32_0 = arith.constant 0 : i32
    %c0_i32_1 = arith.constant 0 : i32
    return %c0_i32, %c0_i32_0 : i32, i32
  }
  func.func @transform_4(%arg0: i32) -> (i32, i32) {
    %c0_i32 = arith.constant 0 : i32
    %c0_i32_0 = arith.constant 0 : i32
    %c0_i32_1 = arith.constant 0 : i32
    return %c0_i32, %c0_i32_0 : i32, i32
  }
  func.func @transform_5(%arg0: i32) -> i32 {
    %c0_i32 = arith.constant 0 : i32
    %c0_i32_0 = arith.constant 0 : i32
    return %c0_i32 : i32
  }
  func.func @transform_6(%arg0: i32) -> (i32, i32) {
    %c0_i32 = arith.constant 0 : i32
    %c0_i32_0 = arith.constant 0 : i32
    return %c0_i32, %arg0 : i32, i32
  }
}

</mosaic_0001>

<llo_original>
// kernel: tpu_custom_call.1
$region0: #{tpu_custom_call.1}
  #allocation0 [shape = 'u32[]', space=smem, size = 0x4, offset = 0x4, fixed_abs, tag = 'smem constant byte address 0x4 - core index']
  #allocation1 [shape = 'u32[144,128]{1,0:T(1,128)}', space=vmem, size = 0x12000, scoped, tag = 'internal scratch']
  #allocation2 [shape = 'f32[32,8]{1,0:T(8,128)}', space=vmem, size = 0x4000, scoped, tag = 'scratch operand']
  #allocation3 [shape = 'f32[64,8]{1,0:T(8,128)}', space=vmem, size = 0x8000, scoped, tag = 'scratch operand']
  %s0 = inlined_call_operand.vmem [shape: s32[8,8], index: 0, kind: input, shape index: {}]
  %s1 = inlined_call_operand.hbm [shape: f32[8,8], index: 1, kind: input, shape index: {}]
  %s2 = inlined_call_operand.hbm [shape: f32[9,32], index: 2, kind: input, shape index: {}]
  %s3 = inlined_call_operand.vmem [shape: f32[32,64], index: 3, kind: input, shape index: {}]
  %s4 = inlined_call_operand.vmem [shape: f32[32,1], index: 4, kind: input, shape index: {}]
  %s5 = inlined_call_operand.vmem [shape: f32[3], index: 5, kind: input, shape index: {}]
  %s6 = inlined_call_operand.hbm [shape: f32[1,8], index: 6, kind: output, shape index: {}]
  %s7 = sld [smem:[#allocation0]]
  $region46: #{tpu_custom_call.1} parent=0
    _
  %s9 = ssub.s32 1, %s7
  %s10 = scalar_select 0, %s9, %s7
  $region1: #{tpu_custom_call.1} parent=0
    #allocation4 [shape = 'u8[4096]{0}', space=vmem, size = 0x1000, scoped, tag = 'input window, operand 1, single buffered']
    #allocation5 [shape = 's32[1]{0}', space=sflag, size = 0x4, scoped, tag = 'scoped memory for tpu_custom_call.1']
    #allocation6 [shape = 's32[1]{0}', space=sflag, size = 0x4, scoped, tag = 'scoped memory for tpu_custom_call.1']
    #allocation7 [shape = 's32[1]{0}', space=sflag, size = 0x4, scoped, tag = 'scoped memory for tpu_custom_call.1']
    #allocation8 [shape = 'u8[8192]{0}', space=vmem, size = 0x2000, scoped, tag = 'input window, operand 2, single buffered']
    #allocation9 [shape = 's32[1]{0}', space=sflag, size = 0x4, scoped, tag = 'scoped memory for tpu_custom_call.1']
    #allocation10 [shape = 'u8[512]{0}', space=smem, size = 0x200, scoped, tag = 'input window, operand 5, single buffered']
    #allocation11 [shape = 'u8[512]{0}', space=vmem, size = 0x400, scoped, tag = 'output window, operand 0, single buffered']
    %11 = vsyncpa [#allocation5], 0
    %12 = vsyncpa [#allocation9], 0
    %13 = vsyncpa [#allocation7], 0
    %14 = vsyncpa [#allocation6], 0
    // Predicated region
    $region2: #{tpu_custom_call.1} parent=1 // pred_check
      _
    $region3: #{tpu_custom_call.1} parent=1 // pred_check_branch
      %16 = sbr.rel (0) target = $region5
    $region4: #{tpu_custom_call.1} parent=1 // pred_region
      _
    $region5: #{tpu_custom_call.1} parent=1 // pred_fallthru
      _
    // Predicated region
    $region6: #{tpu_custom_call.1} parent=1 // pred_check
      _
    $region7: #{tpu_custom_call.1} parent=1 // pred_check_branch
      %18 = sbr.rel (0) target = $region9
    $region8: #{tpu_custom_call.1} parent=1 // pred_region
      %s20 = ssub.s32 128, 128
      %21 = vsyncadd [#allocation5], %s20
      %s23 = sshll.u32 [#allocation4], 4
      %s24 = int_to_ptr.vmem [resolvable:$true] %s23
      %26 = dma.hbm_to_vmem [thread:$0]  %s1, 128, %s24, [#allocation5]
    $region9: #{tpu_custom_call.1} parent=1 // pred_fallthru
      _
    // Predicated region
    $region10: #{tpu_custom_call.1} parent=1 // pred_check
      _
    $region11: #{tpu_custom_call.1} parent=1 // pred_check_branch
      %28 = sbr.rel (0) target = $region13
    $region12: #{tpu_custom_call.1} parent=1 // pred_region
      %s30 = ssub.s32 256, 256
      %31 = vsyncadd [#allocation9], %s30
      %s32 = sshll.u32 [#allocation8], 4
      %s33 = int_to_ptr.vmem [resolvable:$true] %s32
      %38 = dma.hbm_to_vmem [thread:$0]  %s2, 256, %s33, [#allocation9], 128, 128, 8
    $region13: #{tpu_custom_call.1} parent=1 // pred_fallthru
      _
    // Predicated region
    $region14: #{tpu_custom_call.1} parent=1 // pred_check
      _
    $region15: #{tpu_custom_call.1} parent=1 // pred_check_branch
      %40 = sbr.rel (0) target = $region17
    $region16: #{tpu_custom_call.1} parent=1 // pred_region
      _
    $region17: #{tpu_custom_call.1} parent=1 // pred_fallthru
      _
    // Predicated region
    $region18: #{tpu_custom_call.1} parent=1 // pred_check
      _
    $region19: #{tpu_custom_call.1} parent=1 // pred_check_branch
      %42 = sbr.rel (0) target = $region21
    $region20: #{tpu_custom_call.1} parent=1 // pred_region
      _
    $region21: #{tpu_custom_call.1} parent=1 // pred_fallthru
      _
    // Predicated region
    $region22: #{tpu_custom_call.1} parent=1 // pred_check
      _
    $region23: #{tpu_custom_call.1} parent=1 // pred_check_branch
      %44 = sbr.rel (0) target = $region25
    $region24: #{tpu_custom_call.1} parent=1 // pred_region
      %s46 = ssub.s32 16, 16
      %47 = vsyncadd [#allocation7], %s46
      %s49 = sshll.u32 %s5, 4
      %s50 = int_to_ptr.vmem [resolvable:$true] %s49
      %52 = dma.vmem_to_smem %s50, 16, [#allocation10], [#allocation7]
    $region25: #{tpu_custom_call.1} parent=1 // pred_fallthru
      _
    // Predicated region
    $region26: #{tpu_custom_call.1} parent=1 // pred_check
      _
    $region27: #{tpu_custom_call.1} parent=1 // pred_check_branch
      %54 = sbr.rel (0) target = $region29
    $region28: #{tpu_custom_call.1} parent=1 // pred_region
      %55 = dma.done [#allocation5], 128
    $region29: #{tpu_custom_call.1} parent=1 // pred_fallthru
      _
    // Predicated region
    $region30: #{tpu_custom_call.1} parent=1 // pred_check
      _
    $region31: #{tpu_custom_call.1} parent=1 // pred_check_branch
      %57 = sbr.rel (0) target = $region33
    $region32: #{tpu_custom_call.1} parent=1 // pred_region
      %58 = dma.done [#allocation9], 256
    $region33: #{tpu_custom_call.1} parent=1 // pred_fallthru
      _
    // Predicated region
    $region34: #{tpu_custom_call.1} parent=1 // pred_check
      _
    $region35: #{tpu_custom_call.1} parent=1 // pred_check_branch
      %60 = sbr.rel (0) target = $region37
    $region36: #{tpu_custom_call.1} parent=1 // pred_region
      %61 = dma.done [#allocation7], 16
    $region37: #{tpu_custom_call.1} parent=1 // pred_fallthru
      _
    %62 = sfence
    %s63 = sld [smem:[#allocation10]]
    %s64 = sld [smem:[#allocation10 + $0x1]]
    %s65 = sld [smem:[#allocation10 + $0x2]]
    %v66 = vlaneseq
    %v67 = vshrl.u32 %v66, 7
    %v68 = vadd.s32 %v67, 8
    %v69 = vadd.s32 %v67, 16
    %v70 = vadd.s32 %v67, 24
    %v71 = vld [vmem:[%s0] sm:$0x1]
    %v72 = vld [vmem:[#allocation4] sm:$0x1]
    %v73 = vlaneseq
    %v74 = vshrl.u32 %v73, 7
    %v75 = vsub.s32 0, %v74
    %v76 = vrot.slane %v71, %v75
    %vm77 = vcmp.eq.s32.totalorder %v67, %v76
    %vm78 = vcmp.eq.s32.totalorder %v68, %v76
    %vm79 = vcmp.eq.s32.totalorder %v69, %v76
    %vm80 = vcmp.eq.s32.totalorder %v70, %v76
    %v81 = vsel %vm77, 1, 0
    %v82 = vsel %vm78, 1, 0
    %v83 = vsel %vm79, 1, 0
    %v84 = vsel %vm80, 1, 0
    %v85 = vcvt.s32.f32 %v81
    %v86 = vcvt.s32.f32 %v82
    %v87 = vcvt.s32.f32 %v83
    %v88 = vcvt.s32.f32 %v84
    %vm89 = vcmask 64512
    %90 = vst.msk [vmem:[#allocation2] sm:$0xff] %vm89, %v85
    %91 = vst.msk [vmem:[#allocation2 + $0x8] sm:$0xff] %vm89, %v86
    %92 = vst.msk [vmem:[#allocation2 + $0x10] sm:$0xff] %vm89, %v87
    %93 = vst.msk [vmem:[#allocation2 + $0x18] sm:$0xff] %vm89, %v88
    %v94 = vld [vmem:[#allocation8] sm:$0xff]
    %v95 = vld [vmem:[#allocation8 + $0x8] sm:$0x1]
    %v96 = vld [vmem:[#allocation2] sm:$0xff]
    %v97 = vld [vmem:[#allocation2 + $0x8] sm:$0xff]
    %v98 = vld [vmem:[#allocation2 + $0x10] sm:$0xff]
    %v99 = vld [vmem:[#allocation2 + $0x18] sm:$0xff]
    %vm100 = vcmask 261120
    %v102 = vsel %vm100, %v94, 0
    %v105 = vsel %vm100, %v95, 0
    %107 = vmatprep.subr.mxu0 0.0
    %108 = vmatpush1.msra.mxu0 %v96
    %109 = vmatprep.subr.mxu0 0.0
    %110 = vmatpush1.msra.mxu0 %v97
    %111 = vmatprep.subr.mxu0 0.0
    %112 = vmatpush1.msra.mxu0 %v98
    %113 = vmatprep.subr.mxu0 0.0
    %114 = vmatpush1.msra.mxu0 %v99
    %115 = vmatprep.subr.mxu0 0.0
    %116 = vmatpush1.msra.mxu0 0.0
    %117 = vmatprep.subr.mxu0 0.0
    %118 = vmatpush1.msra.mxu0 0.0
    %119 = vmatprep.subr.mxu0 0.0
    %120 = vmatpush1.msra.mxu0 0.0
    %121 = vmatprep.subr.mxu0 0.0
    %122 = vmatpush1.msra.mxu0 0.0
    %123 = vmatprep.subr.mxu0 0.0
    %124 = vmatpush1.msra.mxu0 0.0
    %125 = vmatprep.subr.mxu0 0.0
    %126 = vmatpush1.msra.mxu0 0.0
    %127 = vmatprep.subr.mxu0 0.0
    %128 = vmatpush1.msra.mxu0 0.0
    %129 = vmatprep.subr.mxu0 0.0
    %130 = vmatpush1.msra.mxu0 0.0
    %131 = vmatprep.subr.mxu0 0.0
    %132 = vmatpush1.msra.mxu0 0.0
    %133 = vmatprep.subr.mxu0 0.0
    %134 = vmatpush1.msra.mxu0 0.0
    %135 = vmatprep.subr.mxu0 0.0
    %136 = vmatpush1.msra.mxu0 0.0
    %137 = vmatprep.subr.mxu0 0.0
    %138 = vmatpush1.msra.mxu0 0.0
    %139 = vmatprep.subr.mxu0 0.0
    %140 = vmatpush1.msra.mxu0 0.0
    %141 = vmatprep.subr.mxu0 0.0
    %142 = vmatpush1.msra.mxu0 0.0
    %143 = vmatprep.subr.mxu0 0.0
    %144 = vmatpush1.msra.mxu0 0.0
    %145 = vmatprep.subr.mxu0 0.0
    %146 = vmatpush1.msra.mxu0 0.0
    %147 = vmatprep.subr.mxu0 0.0
    %148 = vmatpush1.msra.mxu0 0.0
    %149 = vmatprep.subr.mxu0 0.0
    %150 = vmatpush1.msra.mxu0 0.0
    %151 = vmatprep.subr.mxu0 0.0
    %152 = vmatpush1.msra.mxu0 0.0
    %153 = vmatprep.subr.mxu0 0.0
    %154 = vmatpush1.msra.mxu0 0.0
    %155 = vmatprep.subr.mxu0 0.0
    %156 = vmatpush1.msra.mxu0 0.0
    %157 = vmatprep.subr.mxu0 0.0
    %158 = vmatpush1.msra.mxu0 0.0
    %159 = vmatprep.subr.mxu0 0.0
    %160 = vmatpush1.msra.mxu0 0.0
    %161 = vmatprep.subr.mxu0 0.0
    %162 = vmatpush1.msra.mxu0 0.0
    %163 = vmatprep.subr.mxu0 0.0
    %164 = vmatpush1.msra.mxu0 0.0
    %165 = vmatprep.subr.mxu0 0.0
    %166 = vmatpush1.msra.mxu0 0.0
    %167 = vmatprep.subr.mxu0 0.0
    %168 = vmatpush1.msra.mxu0 0.0
    %169 = vmatprep.subr.mxu0 0.0
    %170 = vmatpush1.msra.mxu0 0.0
    %171 = vmatprep.mubr.f32.mxu0 0.0
    %172 = vmatmul.mubr.f32.gmra.mrb[0].mxu0 %v102
    %v173 = vpop.f32.mrb[0].mxu0
    %v174 = vadd.f32 0.0, %v173
    %v175 = vpop.f32.mrb[0].mxu0
    %176 = vmatprep.mubr.f32.mxu0 0.0
    %177 = vmatmul.mubr.f32.gmra.mrb[0].mxu0 %v105
    %v178 = vpop.f32.mrb[0].mxu0
    %v179 = vadd.f32 0.0, %v178
    %v180 = vpop.f32.mrb[0].mxu0
    %181 = vdwg.mxu0
    %182 = vst.msk [vmem:[#allocation3] sm:$0xff] %vm89, %v174
    %v183 = vlaneseq
    %v184 = vshrl.u32 %v183, 7
    %v185 = vsub.s32 0, %v184
    %v186 = vrot.slane %v72, %v185
    %v187 = vmul.f32 %v174, %v186
    %v188 = vmul.f32 %v179, %v72
    %v189 = vadd.f32 %v188, 0.0
    %v190 = vadd.f32 %v187, 0.0
    %v191 = vmul.f32 %v187, %v187
    %v192 = vsel %vm89, %v191, 0.0
    %v193 = vrot.slane %v192, 4
    %v194 = vadd.f32 %v192, %v193
    %v195 = vrot.slane %v194, 2
    %v196 = vadd.f32 %v194, %v195
    %v197 = vrot.slane %v196, 1
    %v198 = vadd.f32 %v196, %v197
    %v199 = vadd.f32 %v198, 0.0
    %v200 = vld [vmem:[%s0 + $0x1] sm:$0x1]
    %v201 = vld [vmem:[#allocation4 + $0x1] sm:$0x1]
    %v202 = vlaneseq
    %v203 = vshrl.u32 %v202, 7
    %v204 = vsub.s32 0, %v203
    %v205 = vrot.slane %v200, %v204
    %vm206 = vcmp.eq.s32.totalorder %v67, %v205
    %vm207 = vcmp.eq.s32.totalorder %v68, %v205
    %vm208 = vcmp.eq.s32.totalorder %v69, %v205
    %vm209 = vcmp.eq.s32.totalorder %v70, %v205
    %v210 = vsel %vm206, 1, 0
    %v211 = vsel %vm207, 1, 0
    %v212 = vsel %vm208, 1, 0
    %v213 = vsel %vm209, 1, 0
    %v214 = vcvt.s32.f32 %v210
    %v215 = vcvt.s32.f32 %v211
    %v216 = vcvt.s32.f32 %v212
    %v217 = vcvt.s32.f32 %v213
    %218 = vst.msk [vmem:[#allocation2] sm:$0xff] %vm89, %v214
    %219 = vst.msk [vmem:[#allocation2 + $0x8] sm:$0xff] %vm89, %v215
    %220 = vst.msk [vmem:[#allocation2 + $0x10] sm:$0xff] %vm89, %v216
    %221 = vst.msk [vmem:[#allocation2 + $0x18] sm:$0xff] %vm89, %v217
    %v222 = vld [vmem:[#allocation8] sm:$0xff]
    %v223 = vld [vmem:[#allocation8 + $0x8] sm:$0x1]
    %v224 = vld [vmem:[#allocation2] sm:$0xff]
    %v225 = vld [vmem:[#allocation2 + $0x8] sm:$0xff]
    %v226 = vld [vmem:[#allocation2 + $0x10] sm:$0xff]
    %v227 = vld [vmem:[#allocation2 + $0x18] sm:$0xff]
    %v229 = vsel %vm100, %v222, 0
    %v232 = vsel %vm100, %v223, 0
    %234 = vmatprep.subr.mxu0 0.0
    %235 = vmatpush1.msra.mxu0 %v224
    %236 = vmatprep.subr.mxu0 0.0
    %237 = vmatpush1.msra.mxu0 %v225
    %238 = vmatprep.subr.mxu0 0.0
    %239 = vmatpush1.msra.mxu0 %v226
    %240 = vmatprep.subr.mxu0 0.0
    %241 = vmatpush1.msra.mxu0 %v227
    %242 = vmatprep.subr.mxu0 0.0
    %243 = vmatpush1.msra.mxu0 0.0
    %244 = vmatprep.subr.mxu0 0.0
    %245 = vmatpush1.msra.mxu0 0.0
    %246 = vmatprep.subr.mxu0 0.0
    %247 = vmatpush1.msra.mxu0 0.0
    %248 = vmatprep.subr.mxu0 0.0
    %249 = vmatpush1.msra.mxu0 0.0
    %250 = vmatprep.subr.mxu0 0.0
    %251 = vmatpush1.msra.mxu0 0.0
    %252 = vmatprep.subr.mxu0 0.0
    %253 = vmatpush1.msra.mxu0 0.0
    %254 = vmatprep.subr.mxu0 0.0
    %255 = vmatpush1.msra.mxu0 0.0
    %256 = vmatprep.subr.mxu0 0.0
    %257 = vmatpush1.msra.mxu0 0.0
    %258 = vmatprep.subr.mxu0 0.0
    %259 = vmatpush1.msra.mxu0 0.0
    %260 = vmatprep.subr.mxu0 0.0
    %261 = vmatpush1.msra.mxu0 0.0
    %262 = vmatprep.subr.mxu0 0.0
    %263 = vmatpush1.msra.mxu0 0.0
    %264 = vmatprep.subr.mxu0 0.0
    %265 = vmatpush1.msra.mxu0 0.0
    %266 = vmatprep.subr.mxu0 0.0
    %267 = vmatpush1.msra.mxu0 0.0
    %268 = vmatprep.subr.mxu0 0.0
    %269 = vmatpush1.msra.mxu0 0.0
    %270 = vmatprep.subr.mxu0 0.0
    %271 = vmatpush1.msra.mxu0 0.0
    %272 = vmatprep.subr.mxu0 0.0
    %273 = vmatpush1.msra.mxu0 0.0
    %274 = vmatprep.subr.mxu0 0.0
    %275 = vmatpush1.msra.mxu0 0.0
    %276 = vmatprep.subr.mxu0 0.0
    %277 = vmatpush1.msra.mxu0 0.0
    %278 = vmatprep.subr.mxu0 0.0
    %279 = vmatpush1.msra.mxu0 0.0
    %280 = vmatprep.subr.mxu0 0.0
    %281 = vmatpush1.msra.mxu0 0.0
    %282 = vmatprep.subr.mxu0 0.0
    %283 = vmatpush1.msra.mxu0 0.0
    %284 = vmatprep.subr.mxu0 0.0
    %285 = vmatpush1.msra.mxu0 0.0
    %286 = vmatprep.subr.mxu0 0.0
    %287 = vmatpush1.msra.mxu0 0.0
    %288 = vmatprep.subr.mxu0 0.0
    %289 = vmatpush1.msra.mxu0 0.0
    %290 = vmatprep.subr.mxu0 0.0
    %291 = vmatpush1.msra.mxu0 0.0
    %292 = vmatprep.subr.mxu0 0.0
    %293 = vmatpush1.msra.mxu0 0.0
    %294 = vmatprep.subr.mxu0 0.0
    %295 = vmatpush1.msra.mxu0 0.0
    %296 = vmatprep.subr.mxu0 0.0
    %297 = vmatpush1.msra.mxu0 0.0
    %298 = vmatprep.mubr.f32.mxu0 0.0
    %299 = vmatmul.mubr.f32.gmra.mrb[0].mxu0 %v229
    %v300 = vpop.f32.mrb[0].mxu0
    %v301 = vadd.f32 0.0, %v300
    %v302 = vpop.f32.mrb[0].mxu0
    %303 = vmatprep.mubr.f32.mxu0 0.0
    %304 = vmatmul.mubr.f32.gmra.mrb[0].mxu0 %v232
    %v305 = vpop.f32.mrb[0].mxu0
    %v306 = vadd.f32 0.0, %v305
    %v307 = vpop.f32.mrb[0].mxu0
    %308 = vdwg.mxu0
    %309 = vst.msk [vmem:[#allocation3 + $0x8] sm:$0xff] %vm89, %v301
    %v310 = vlaneseq
    %v311 = vshrl.u32 %v310, 7
    %v312 = vsub.s32 0, %v311
    %v313 = vrot.slane %v201, %v312
    %v314 = vmul.f32 %v301, %v313
    %v315 = vmul.f32 %v306, %v201
    %v316 = vadd.f32 %v189, %v315
    %v317 = vadd.f32 %v190, %v314
    %v318 = vmul.f32 %v314, %v314
    %v319 = vsel %vm89, %v318, 0.0
    %v320 = vrot.slane %v319, 4
    %v321 = vadd.f32 %v319, %v320
    %v322 = vrot.slane %v321, 2
    %v323 = vadd.f32 %v321, %v322
    %v324 = vrot.slane %v323, 1
    %v325 = vadd.f32 %v323, %v324
    %v326 = vadd.f32 %v199, %v325
    %v327 = vld [vmem:[%s0 + $0x2] sm:$0x1]
    %v328 = vld [vmem:[#allocation4 + $0x2] sm:$0x1]
    %v329 = vlaneseq
    %v330 = vshrl.u32 %v329, 7
    %v331 = vsub.s32 0, %v330
    %v332 = vrot.slane %v327, %v331
    %vm333 = vcmp.eq.s32.totalorder %v67, %v332
    %vm334 = vcmp.eq.s32.totalorder %v68, %v332
    %vm335 = vcmp.eq.s32.totalorder %v69, %v332
    %vm336 = vcmp.eq.s32.totalorder %v70, %v332
    %v337 = vsel %vm333, 1, 0
    %v338 = vsel %vm334, 1, 0
    %v339 = vsel %vm335, 1, 0
    %v340 = vsel %vm336, 1, 0
    %v341 = vcvt.s32.f32 %v337
    %v342 = vcvt.s32.f32 %v338
    %v343 = vcvt.s32.f32 %v339
    %v344 = vcvt.s32.f32 %v340
    %345 = vst.msk [vmem:[#allocation2] sm:$0xff] %vm89, %v341
    %346 = vst.msk [vmem:[#allocation2 + $0x8] sm:$0xff] %vm89, %v342
    %347 = vst.msk [vmem:[#allocation2 + $0x10] sm:$0xff] %vm89, %v343
    %348 = vst.msk [vmem:[#allocation2 + $0x18] sm:$0xff] %vm89, %v344
    %v349 = vld [vmem:[#allocation8] sm:$0xff]
    %v350 = vld [vmem:[#allocation8 + $0x8] sm:$0x1]
    %v351 = vld [vmem:[#allocation2] sm:$0xff]
    %v352 = vld [vmem:[#allocation2 + $0x8] sm:$0xff]
    %v353 = vld [vmem:[#allocation2 + $0x10] sm:$0xff]
    %v354 = vld [vmem:[#allocation2 + $0x18] sm:$0xff]
    %v356 = vsel %vm100, %v349, 0
    %v359 = vsel %vm100, %v350, 0
    %361 = vmatprep.subr.mxu0 0.0
    %362 = vmatpush1.msra.mxu0 %v351
    %363 = vmatprep.subr.mxu0 0.0
    %364 = vmatpush1.msra.mxu0 %v352
    %365 = vmatprep.subr.mxu0 0.0
    %366 = vmatpush1.msra.mxu0 %v353
    %367 = vmatprep.subr.mxu0 0.0
    %368 = vmatpush1.msra.mxu0 %v354
    %369 = vmatprep.subr.mxu0 0.0
    %370 = vmatpush1.msra.mxu0 0.0
    %371 = vmatprep.subr.mxu0 0.0
    %372 = vmatpush1.msra.mxu0 0.0
    %373 = vmatprep.subr.mxu0 0.0
    %374 = vmatpush1.msra.mxu0 0.0
    %375 = vmatprep.subr.mxu0 0.0
    %376 = vmatpush1.msra.mxu0 0.0
    %377 = vmatprep.subr.mxu0 0.0
    %378 = vmatpush1.msra.mxu0 0.0
    %379 = vmatprep.subr.mxu0 0.0
    %380 = vmatpush1.msra.mxu0 0.0
    %381 = vmatprep.subr.mxu0 0.0
    %382 = vmatpush1.msra.mxu0 0.0
    %383 = vmatprep.subr.mxu0 0.0
    %384 = vmatpush1.msra.mxu0 0.0
    %385 = vmatprep.subr.mxu0 0.0
    %386 = vmatpush1.msra.mxu0 0.0
    %387 = vmatprep.subr.mxu0 0.0
    %388 = vmatpush1.msra.mxu0 0.0
    %389 = vmatprep.subr.mxu0 0.0
    %390 = vmatpush1.msra.mxu0 0.0
    %391 = vmatprep.subr.mxu0 0.0
    %392 = vmatpush1.msra.mxu0 0.0
    %393 = vmatprep.subr.mxu0 0.0
    %394 = vmatpush1.msra.mxu0 0.0
    %395 = vmatprep.subr.mxu0 0.0
    %396 = vmatpush1.msra.mxu0 0.0
    %397 = vmatprep.subr.mxu0 0.0
    %398 = vmatpush1.msra.mxu0 0.0
    %399 = vmatprep.subr.mxu0 0.0
    %400 = vmatpush1.msra.mxu0 0.0
    %401 = vmatprep.subr.mxu0 0.0
    %402 = vmatpush1.msra.mxu0 0.0
    %403 = vmatprep.subr.mxu0 0.0
    %404 = vmatpush1.msra.mxu0 0.0
    %405 = vmatprep.subr.mxu0 0.0
    %406 = vmatpush1.msra.mxu0 0.0
    %407 = vmatprep.subr.mxu0 0.0
    %408 = vmatpush1.msra.mxu0 0.0
    %409 = vmatprep.subr.mxu0 0.0
    %410 = vmatpush1.msra.mxu0 0.0
    %411 = vmatprep.subr.mxu0 0.0
    %412 = vmatpush1.msra.mxu0 0.0
    %413 = vmatprep.subr.mxu0 0.0
    %414 = vmatpush1.msra.mxu0 0.0
    %415 = vmatprep.subr.mxu0 0.0
    %416 = vmatpush1.msra.mxu0 0.0
    %417 = vmatprep.subr.mxu0 0.0
    %418 = vmatpush1.msra.mxu0 0.0
    %419 = vmatprep.subr.mxu0 0.0
    %420 = vmatpush1.msra.mxu0 0.0
    %421 = vmatprep.subr.mxu0 0.0
    %422 = vmatpush1.msra.mxu0 0.0
    %423 = vmatprep.subr.mxu0 0.0
    %424 = vmatpush1.msra.mxu0 0.0
    %425 = vmatprep.mubr.f32.mxu0 0.0
    %426 = vmatmul.mubr.f32.gmra.mrb[0].mxu0 %v356
    %v427 = vpop.f32.mrb[0].mxu0
    %v428 = vadd.f32 0.0, %v427
    %v429 = vpop.f32.mrb[0].mxu0
    %430 = vmatprep.mubr.f32.mxu0 0.0
    %431 = vmatmul.mubr.f32.gmra.mrb[0].mxu0 %v359
    %v432 = vpop.f32.mrb[0].mxu0
    %v433 = vadd.f32 0.0, %v432
    %v434 = vpop.f32.mrb[0].mxu0
    %435 = vdwg.mxu0
    %436 = vst.msk [vmem:[#allocation3 + $0x10] sm:$0xff] %vm89, %v428
    %v437 = vlaneseq
    %v438 = vshrl.u32 %v437, 7
    %v439 = vsub.s32 0, %v438
    %v440 = vrot.slane %v328, %v439
    %v441 = vmul.f32 %v428, %v440
    %v442 = vmul.f32 %v433, %v328
    %v443 = vadd.f32 %v316, %v442
    %v444 = vadd.f32 %v317, %v441
    %v445 = vmul.f32 %v441, %v441
    %v446 = vsel %vm89, %v445, 0.0
    %v447 = vrot.slane %v446, 4
    %v448 = vadd.f32 %v446, %v447
    %v449 = vrot.slane %v448, 2
    %v450 = vadd.f32 %v448, %v449
    %v451 = vrot.slane %v450, 1
    %v452 = vadd.f32 %v450, %v451
    %v453 = vadd.f32 %v326, %v452
    %v454 = vld [vmem:[%s0 + $0x3] sm:$0x1]
    %v455 = vld [vmem:[#allocation4 + $0x3] sm:$0x1]
    %v456 = vlaneseq
    %v457 = vshrl.u32 %v456, 7
    %v458 = vsub.s32 0, %v457
    %v459 = vrot.slane %v454, %v458
    %vm460 = vcmp.eq.s32.totalorder %v67, %v459
    %vm461 = vcmp.eq.s32.totalorder %v68, %v459
    %vm462 = vcmp.eq.s32.totalorder %v69, %v459
    %vm463 = vcmp.eq.s32.totalorder %v70, %v459
    %v464 = vsel %vm460, 1, 0
    %v465 = vsel %vm461, 1, 0
    %v466 = vsel %vm462, 1, 0
    %v467 = vsel %vm463, 1, 0
    %v468 = vcvt.s32.f32 %v464
    %v469 = vcvt.s32.f32 %v465
    %v470 = vcvt.s32.f32 %v466
    %v471 = vcvt.s32.f32 %v467
    %472 = vst.msk [vmem:[#allocation2] sm:$0xff] %vm89, %v468
    %473 = vst.msk [vmem:[#allocation2 + $0x8] sm:$0xff] %vm89, %v469
    %474 = vst.msk [vmem:[#allocation2 + $0x10] sm:$0xff] %vm89, %v470
    %475 = vst.msk [vmem:[#allocation2 + $0x18] sm:$0xff] %vm89, %v471
    %v476 = vld [vmem:[#allocation8] sm:$0xff]
    %v477 = vld [vmem:[#allocation8 + $0x8] sm:$0x1]
    %v478 = vld [vmem:[#allocation2] sm:$0xff]
    %v479 = vld [vmem:[#allocation2 + $0x8] sm:$0xff]
    %v480 = vld [vmem:[#allocation2 + $0x10] sm:$0xff]
    %v481 = vld [vmem:[#allocation2 + $0x18] sm:$0xff]
    %v483 = vsel %vm100, %v476, 0
    %v486 = vsel %vm100, %v477, 0
    %488 = vmatprep.subr.mxu0 0.0
    %489 = vmatpush1.msra.mxu0 %v478
    %490 = vmatprep.subr.mxu0 0.0
    %491 = vmatpush1.msra.mxu0 %v479
    %492 = vmatprep.subr.mxu0 0.0
    %493 = vmatpush1.msra.mxu0 %v480
    %494 = vmatprep.subr.mxu0 0.0
    %495 = vmatpush1.msra.mxu0 %v481
    %496 = vmatprep.subr.mxu0 0.0
    %497 = vmatpush1.msra.mxu0 0.0
    %498 = vmatprep.subr.mxu0 0.0
    %499 = vmatpush1.msra.mxu0 0.0
    %500 = vmatprep.subr.mxu0 0.0
    %501 = vmatpush1.msra.mxu0 0.0
    %502 = vmatprep.subr.mxu0 0.0
    %503 = vmatpush1.msra.mxu0 0.0
    %504 = vmatprep.subr.mxu0 0.0
    %505 = vmatpush1.msra.mxu0 0.0
    %506 = vmatprep.subr.mxu0 0.0
    %507 = vmatpush1.msra.mxu0 0.0
    %508 = vmatprep.subr.mxu0 0.0
    %509 = vmatpush1.msra.mxu0 0.0
    %510 = vmatprep.subr.mxu0 0.0
    %511 = vmatpush1.msra.mxu0 0.0
    %512 = vmatprep.subr.mxu0 0.0
    %513 = vmatpush1.msra.mxu0 0.0
    %514 = vmatprep.subr.mxu0 0.0
    %515 = vmatpush1.msra.mxu0 0.0
    %516 = vmatprep.subr.mxu0 0.0
    %517 = vmatpush1.msra.mxu0 0.0
    %518 = vmatprep.subr.mxu0 0.0
    %519 = vmatpush1.msra.mxu0 0.0
    %520 = vmatprep.subr.mxu0 0.0
    %521 = vmatpush1.msra.mxu0 0.0
    %522 = vmatprep.subr.mxu0 0.0
    %523 = vmatpush1.msra.mxu0 0.0
    %524 = vmatprep.subr.mxu0 0.0
    %525 = vmatpush1.msra.mxu0 0.0
    %526 = vmatprep.subr.mxu0 0.0
    %527 = vmatpush1.msra.mxu0 0.0
    %528 = vmatprep.subr.mxu0 0.0
    %529 = vmatpush1.msra.mxu0 0.0
    %530 = vmatprep.subr.mxu0 0.0
    %531 = vmatpush1.msra.mxu0 0.0
    %532 = vmatprep.subr.mxu0 0.0
    %533 = vmatpush1.msra.mxu0 0.0
    %534 = vmatprep.subr.mxu0 0.0
    %535 = vmatpush1.msra.mxu0 0.0
    %536 = vmatprep.subr.mxu0 0.0
    %537 = vmatpush1.msra.mxu0 0.0
    %538 = vmatprep.subr.mxu0 0.0
    %539 = vmatpush1.msra.mxu0 0.0
    %540 = vmatprep.subr.mxu0 0.0
    %541 = vmatpush1.msra.mxu0 0.0
    %542 = vmatprep.subr.mxu0 0.0
    %543 = vmatpush1.msra.mxu0 0.0
    %544 = vmatprep.subr.mxu0 0.0
    %545 = vmatpush1.msra.mxu0 0.0
    %546 = vmatprep.subr.mxu0 0.0
    %547 = vmatpush1.msra.mxu0 0.0
    %548 = vmatprep.subr.mxu0 0.0
    %549 = vmatpush1.msra.mxu0 0.0
    %550 = vmatprep.subr.mxu0 0.0
    %551 = vmatpush1.msra.mxu0 0.0
    %552 = vmatprep.mubr.f32.mxu0 0.0
    %553 = vmatmul.mubr.f32.gmra.mrb[0].mxu0 %v483
    %v554 = vpop.f32.mrb[0].mxu0
    %v555 = vadd.f32 0.0, %v554
    %v556 = vpop.f32.mrb[0].mxu0
    %557 = vmatprep.mubr.f32.mxu0 0.0
    %558 = vmatmul.mubr.f32.gmra.mrb[0].mxu0 %v486
    %v559 = vpop.f32.mrb[0].mxu0
    %v560 = vadd.f32 0.0, %v559
    %v561 = vpop.f32.mrb[0].mxu0
    %562 = vdwg.mxu0
    %563 = vst.msk [vmem:[#allocation3 + $0x18] sm:$0xff] %vm89, %v555
    %v564 = vlaneseq
    %v565 = vshrl.u32 %v564, 7
    %v566 = vsub.s32 0, %v565
    %v567 = vrot.slane %v455, %v566
    %v568 = vmul.f32 %v555, %v567
    %v569 = vmul.f32 %v560, %v455
    %v570 = vadd.f32 %v443, %v569
    %v571 = vadd.f32 %v444, %v568
    %v572 = vmul.f32 %v568, %v568
    %v573 = vsel %vm89, %v572, 0.0
    %v574 = vrot.slane %v573, 4
    %v575 = vadd.f32 %v573, %v574
    %v576 = vrot.slane %v575, 2
    %v577 = vadd.f32 %v575, %v576
    %v578 = vrot.slane %v577, 1
    %v579 = vadd.f32 %v577, %v578
    %v580 = vadd.f32 %v453, %v579
    %v581 = vld [vmem:[%s0 + $0x4] sm:$0x1]
    %v582 = vld [vmem:[#allocation4 + $0x4] sm:$0x1]
    %v583 = vlaneseq
    %v584 = vshrl.u32 %v583, 7
    %v585 = vsub.s32 0, %v584
    %v586 = vrot.slane %v581, %v585
    %vm587 = vcmp.eq.s32.totalorder %v67, %v586
    %vm588 = vcmp.eq.s32.totalorder %v68, %v586
    %vm589 = vcmp.eq.s32.totalorder %v69, %v586
    %vm590 = vcmp.eq.s32.totalorder %v70, %v586
    %v591 = vsel %vm587, 1, 0
    %v592 = vsel %vm588, 1, 0
    %v593 = vsel %vm589, 1, 0
    %v594 = vsel %vm590, 1, 0
    %v595 = vcvt.s32.f32 %v591
    %v596 = vcvt.s32.f32 %v592
    %v597 = vcvt.s32.f32 %v593
    %v598 = vcvt.s32.f32 %v594
    %599 = vst.msk [vmem:[#allocation2] sm:$0xff] %vm89, %v595
    %600 = vst.msk [vmem:[#allocation2 + $0x8] sm:$0xff] %vm89, %v596
    %601 = vst.msk [vmem:[#allocation2 + $0x10] sm:$0xff] %vm89, %v597
    %602 = vst.msk [vmem:[#allocation2 + $0x18] sm:$0xff] %vm89, %v598
    %v603 = vld [vmem:[#allocation8] sm:$0xff]
    %v604 = vld [vmem:[#allocation8 + $0x8] sm:$0x1]
    %v605 = vld [vmem:[#allocation2] sm:$0xff]
    %v606 = vld [vmem:[#allocation2 + $0x8] sm:$0xff]
    %v607 = vld [vmem:[#allocation2 + $0x10] sm:$0xff]
    %v608 = vld [vmem:[#allocation2 + $0x18] sm:$0xff]
    %v610 = vsel %vm100, %v603, 0
    %v613 = vsel %vm100, %v604, 0
    %615 = vmatprep.subr.mxu0 0.0
    %616 = vmatpush1.msra.mxu0 %v605
    %617 = vmatprep.subr.mxu0 0.0
    %618 = vmatpush1.msra.mxu0 %v606
    %619 = vmatprep.subr.mxu0 0.0
    %620 = vmatpush1.msra.mxu0 %v607
    %621 = vmatprep.subr.mxu0 0.0
    %622 = vmatpush1.msra.mxu0 %v608
    %623 = vmatprep.subr.mxu0 0.0
    %624 = vmatpush1.msra.mxu0 0.0
    %625 = vmatprep.subr.mxu0 0.0
    %626 = vmatpush1.msra.mxu0 0.0
    %627 = vmatprep.subr.mxu0 0.0
    %628 = vmatpush1.msra.mxu0 0.0
    %629 = vmatprep.subr.mxu0 0.0
    %630 = vmatpush1.msra.mxu0 0.0
    %631 = vmatprep.subr.mxu0 0.0
    %632 = vmatpush1.msra.mxu0 0.0
    %633 = vmatprep.subr.mxu0 0.0
    %634 = vmatpush1.msra.mxu0 0.0
    %635 = vmatprep.subr.mxu0 0.0
    %636 = vmatpush1.msra.mxu0 0.0
    %637 = vmatprep.subr.mxu0 0.0
    %638 = vmatpush1.msra.mxu0 0.0
    %639 = vmatprep.subr.mxu0 0.0
    %640 = vmatpush1.msra.mxu0 0.0
    %641 = vmatprep.subr.mxu0 0.0
    %642 = vmatpush1.msra.mxu0 0.0
    %643 = vmatprep.subr.mxu0 0.0
    %644 = vmatpush1.msra.mxu0 0.0
    %645 = vmatprep.subr.mxu0 0.0
    %646 = vmatpush1.msra.mxu0 0.0
    %647 = vmatprep.subr.mxu0 0.0
    %648 = vmatpush1.msra.mxu0 0.0
    %649 = vmatprep.subr.mxu0 0.0
    %650 = vmatpush1.msra.mxu0 0.0
    %651 = vmatprep.subr.mxu0 0.0
    %652 = vmatpush1.msra.mxu0 0.0
    %653 = vmatprep.subr.mxu0 0.0
    %654 = vmatpush1.msra.mxu0 0.0
    %655 = vmatprep.subr.mxu0 0.0
    %656 = vmatpush1.msra.mxu0 0.0
    %657 = vmatprep.subr.mxu0 0.0
    %658 = vmatpush1.msra.mxu0 0.0
    %659 = vmatprep.subr.mxu0 0.0
    %660 = vmatpush1.msra.mxu0 0.0
    %661 = vmatprep.subr.mxu0 0.0
    %662 = vmatpush1.msra.mxu0 0.0
    %663 = vmatprep.subr.mxu0 0.0
    %664 = vmatpush1.msra.mxu0 0.0
    %665 = vmatprep.subr.mxu0 0.0
    %666 = vmatpush1.msra.mxu0 0.0
    %667 = vmatprep.subr.mxu0 0.0
    %668 = vmatpush1.msra.mxu0 0.0
    %669 = vmatprep.subr.mxu0 0.0
    %670 = vmatpush1.msra.mxu0 0.0
    %671 = vmatprep.subr.mxu0 0.0
    %672 = vmatpush1.msra.mxu0 0.0
    %673 = vmatprep.subr.mxu0 0.0
    %674 = vmatpush1.msra.mxu0 0.0
    %675 = vmatprep.subr.mxu0 0.0
    %676 = vmatpush1.msra.mxu0 0.0
    %677 = vmatprep.subr.mxu0 0.0
    %678 = vmatpush1.msra.mxu0 0.0
    %679 = vmatprep.mubr.f32.mxu0 0.0
    %680 = vmatmul.mubr.f32.gmra.mrb[0].mxu0 %v610
    %v681 = vpop.f32.mrb[0].mxu0
    %v682 = vadd.f32 0.0, %v681
    %v683 = vpop.f32.mrb[0].mxu0
    %684 = vmatprep.mubr.f32.mxu0 0.0
    %685 = vmatmul.mubr.f32.gmra.mrb[0].mxu0 %v613
    %v686 = vpop.f32.mrb[0].mxu0
    %v687 = vadd.f32 0.0, %v686
    %v688 = vpop.f32.mrb[0].mxu0
    %689 = vdwg.mxu0
    %690 = vst.msk [vmem:[#allocation3 + $0x20] sm:$0xff] %vm89, %v682
    %v691 = vlaneseq
    %v692 = vshrl.u32 %v691, 7
    %v693 = vsub.s32 0, %v692
    %v694 = vrot.slane %v582, %v693
    %v695 = vmul.f32 %v682, %v694
    %v696 = vmul.f32 %v687, %v582
    %v697 = vadd.f32 %v570, %v696
    %v698 = vadd.f32 %v571, %v695
    %v699 = vmul.f32 %v695, %v695
    %v700 = vsel %vm89, %v699, 0.0
    %v701 = vrot.slane %v700, 4
    %v702 = vadd.f32 %v700, %v701
    %v703 = vrot.slane %v702, 2
    %v704 = vadd.f32 %v702, %v703
    %v705 = vrot.slane %v704, 1
    %v706 = vadd.f32 %v704, %v705
    %v707 = vadd.f32 %v580, %v706
    %v708 = vld [vmem:[%s0 + $0x5] sm:$0x1]
    %v709 = vld [vmem:[#allocation4 + $0x5] sm:$0x1]
    %v710 = vlaneseq
    %v711 = vshrl.u32 %v710, 7
    %v712 = vsub.s32 0, %v711
    %v713 = vrot.slane %v708, %v712
    %vm714 = vcmp.eq.s32.totalorder %v67, %v713
    %vm715 = vcmp.eq.s32.totalorder %v68, %v713
    %vm716 = vcmp.eq.s32.totalorder %v69, %v713
    %vm717 = vcmp.eq.s32.totalorder %v70, %v713
    %v718 = vsel %vm714, 1, 0
    %v719 = vsel %vm715, 1, 0
    %v720 = vsel %vm716, 1, 0
    %v721 = vsel %vm717, 1, 0
    %v722 = vcvt.s32.f32 %v718
    %v723 = vcvt.s32.f32 %v719
    %v724 = vcvt.s32.f32 %v720
    %v725 = vcvt.s32.f32 %v721
    %726 = vst.msk [vmem:[#allocation2] sm:$0xff] %vm89, %v722
    %727 = vst.msk [vmem:[#allocation2 + $0x8] sm:$0xff] %vm89, %v723
    %728 = vst.msk [vmem:[#allocation2 + $0x10] sm:$0xff] %vm89, %v724
    %729 = vst.msk [vmem:[#allocation2 + $0x18] sm:$0xff] %vm89, %v725
    %v730 = vld [vmem:[#allocation8] sm:$0xff]
    %v731 = vld [vmem:[#allocation8 + $0x8] sm:$0x1]
    %v732 = vld [vmem:[#allocation2] sm:$0xff]
    %v733 = vld [vmem:[#allocation2 + $0x8] sm:$0xff]
    %v734 = vld [vmem:[#allocation2 + $0x10] sm:$0xff]
    %v735 = vld [vmem:[#allocation2 + $0x18] sm:$0xff]
    %v737 = vsel %vm100, %v730, 0
    %v740 = vsel %vm100, %v731, 0
    %742 = vmatprep.subr.mxu0 0.0
    %743 = vmatpush1.msra.mxu0 %v732
    %744 = vmatprep.subr.mxu0 0.0
    %745 = vmatpush1.msra.mxu0 %v733
    %746 = vmatprep.subr.mxu0 0.0
    %747 = vmatpush1.msra.mxu0 %v734
    %748 = vmatprep.subr.mxu0 0.0
    %749 = vmatpush1.msra.mxu0 %v735
    %750 = vmatprep.subr.mxu0 0.0
    %751 = vmatpush1.msra.mxu0 0.0
    %752 = vmatprep.subr.mxu0 0.0
    %753 = vmatpush1.msra.mxu0 0.0
    %754 = vmatprep.subr.mxu0 0.0
    %755 = vmatpush1.msra.mxu0 0.0
    %756 = vmatprep.subr.mxu0 0.0
    %757 = vmatpush1.msra.mxu0 0.0
    %758 = vmatprep.subr.mxu0 0.0
    %759 = vmatpush1.msra.mxu0 0.0
    %760 = vmatprep.subr.mxu0 0.0
    %761 = vmatpush1.msra.mxu0 0.0
    %762 = vmatprep.subr.mxu0 0.0
    %763 = vmatpush1.msra.mxu0 0.0
    %764 = vmatprep.subr.mxu0 0.0
    %765 = vmatpush1.msra.mxu0 0.0
    %766 = vmatprep.subr.mxu0 0.0
    %767 = vmatpush1.msra.mxu0 0.0
    %768 = vmatprep.subr.mxu0 0.0
    %769 = vmatpush1.msra.mxu0 0.0
    %770 = vmatprep.subr.mxu0 0.0
    %771 = vmatpush1.msra.mxu0 0.0
    %772 = vmatprep.subr.mxu0 0.0
    %773 = vmatpush1.msra.mxu0 0.0
    %774 = vmatprep.subr.mxu0 0.0
    %775 = vmatpush1.msra.mxu0 0.0
    %776 = vmatprep.subr.mxu0 0.0
    %777 = vmatpush1.msra.mxu0 0.0
    %778 = vmatprep.subr.mxu0 0.0
    %779 = vmatpush1.msra.mxu0 0.0
    %780 = vmatprep.subr.mxu0 0.0
    %781 = vmatpush1.msra.mxu0 0.0
    %782 = vmatprep.subr.mxu0 0.0
    %783 = vmatpush1.msra.mxu0 0.0
    %784 = vmatprep.subr.mxu0 0.0
    %785 = vmatpush1.msra.mxu0 0.0
    %786 = vmatprep.subr.mxu0 0.0
    %787 = vmatpush1.msra.mxu0 0.0
    %788 = vmatprep.subr.mxu0 0.0
    %789 = vmatpush1.msra.mxu0 0.0
    %790 = vmatprep.subr.mxu0 0.0
    %791 = vmatpush1.msra.mxu0 0.0
    %792 = vmatprep.subr.mxu0 0.0
    %793 = vmatpush1.msra.mxu0 0.0
    %794 = vmatprep.subr.mxu0 0.0
    %795 = vmatpush1.msra.mxu0 0.0
    %796 = vmatprep.subr.mxu0 0.0
    %797 = vmatpush1.msra.mxu0 0.0
    %798 = vmatprep.subr.mxu0 0.0
    %799 = vmatpush1.msra.mxu0 0.0
    %800 = vmatprep.subr.mxu0 0.0
    %801 = vmatpush1.msra.mxu0 0.0
    %802 = vmatprep.subr.mxu0 0.0
    %803 = vmatpush1.msra.mxu0 0.0
    %804 = vmatprep.subr.mxu0 0.0
    %805 = vmatpush1.msra.mxu0 0.0
    %806 = vmatprep.mubr.f32.mxu0 0.0
    %807 = vmatmul.mubr.f32.gmra.mrb[0].mxu0 %v737
    %v808 = vpop.f32.mrb[0].mxu0
    %v809 = vadd.f32 0.0, %v808
    %v810 = vpop.f32.mrb[0].mxu0
    %811 = vmatprep.mubr.f32.mxu0 0.0
    %812 = vmatmul.mubr.f32.gmra.mrb[0].mxu0 %v740
    %v813 = vpop.f32.mrb[0].mxu0
    %v814 = vadd.f32 0.0, %v813
    %v815 = vpop.f32.mrb[0].mxu0
    %816 = vdwg.mxu0
    %817 = vst.msk [vmem:[#allocation3 + $0x28] sm:$0xff] %vm89, %v809
    %v818 = vlaneseq
    %v819 = vshrl.u32 %v818, 7
    %v820 = vsub.s32 0, %v819
    %v821 = vrot.slane %v709, %v820
    %v822 = vmul.f32 %v809, %v821
    %v823 = vmul.f32 %v814, %v709
    %v824 = vadd.f32 %v697, %v823
    %v825 = vadd.f32 %v698, %v822
    %v826 = vmul.f32 %v822, %v822
    %v827 = vsel %vm89, %v826, 0.0
    %v828 = vrot.slane %v827, 4
    %v829 = vadd.f32 %v827, %v828
    %v830 = vrot.slane %v829, 2
    %v831 = vadd.f32 %v829, %v830
    %v832 = vrot.slane %v831, 1
    %v833 = vadd.f32 %v831, %v832
    %v834 = vadd.f32 %v707, %v833
    %v835 = vld [vmem:[%s0 + $0x6] sm:$0x1]
    %v836 = vld [vmem:[#allocation4 + $0x6] sm:$0x1]
    %v837 = vlaneseq
    %v838 = vshrl.u32 %v837, 7
    %v839 = vsub.s32 0, %v838
    %v840 = vrot.slane %v835, %v839
    %vm841 = vcmp.eq.s32.totalorder %v67, %v840
    %vm842 = vcmp.eq.s32.totalorder %v68, %v840
    %vm843 = vcmp.eq.s32.totalorder %v69, %v840
    %vm844 = vcmp.eq.s32.totalorder %v70, %v840
    %v845 = vsel %vm841, 1, 0
    %v846 = vsel %vm842, 1, 0
    %v847 = vsel %vm843, 1, 0
    %v848 = vsel %vm844, 1, 0
    %v849 = vcvt.s32.f32 %v845
    %v850 = vcvt.s32.f32 %v846
    %v851 = vcvt.s32.f32 %v847
    %v852 = vcvt.s32.f32 %v848
    %853 = vst.msk [vmem:[#allocation2] sm:$0xff] %vm89, %v849
    %854 = vst.msk [vmem:[#allocation2 + $0x8] sm:$0xff] %vm89, %v850
    %855 = vst.msk [vmem:[#allocation2 + $0x10] sm:$0xff] %vm89, %v851
    %856 = vst.msk [vmem:[#allocation2 + $0x18] sm:$0xff] %vm89, %v852
    %v857 = vld [vmem:[#allocation8] sm:$0xff]
    %v858 = vld [vmem:[#allocation8 + $0x8] sm:$0x1]
    %v859 = vld [vmem:[#allocation2] sm:$0xff]
    %v860 = vld [vmem:[#allocation2 + $0x8] sm:$0xff]
    %v861 = vld [vmem:[#allocation2 + $0x10] sm:$0xff]
    %v862 = vld [vmem:[#allocation2 + $0x18] sm:$0xff]
    %v864 = vsel %vm100, %v857, 0
    %v867 = vsel %vm100, %v858, 0
    %869 = vmatprep.subr.mxu0 0.0
    %870 = vmatpush1.msra.mxu0 %v859
    %871 = vmatprep.subr.mxu0 0.0
    %872 = vmatpush1.msra.mxu0 %v860
    %873 = vmatprep.subr.mxu0 0.0
    %874 = vmatpush1.msra.mxu0 %v861
    %875 = vmatprep.subr.mxu0 0.0
    %876 = vmatpush1.msra.mxu0 %v862
    %877 = vmatprep.subr.mxu0 0.0
    %878 = vmatpush1.msra.mxu0 0.0
    %879 = vmatprep.subr.mxu0 0.0
    %880 = vmatpush1.msra.mxu0 0.0
    %881 = vmatprep.subr.mxu0 0.0
    %882 = vmatpush1.msra.mxu0 0.0
    %883 = vmatprep.subr.mxu0 0.0
    %884 = vmatpush1.msra.mxu0 0.0
    %885 = vmatprep.subr.mxu0 0.0
    %886 = vmatpush1.msra.mxu0 0.0
    %887 = vmatprep.subr.mxu0 0.0
    %888 = vmatpush1.msra.mxu0 0.0
    %889 = vmatprep.subr.mxu0 0.0
    %890 = vmatpush1.msra.mxu0 0.0
    %891 = vmatprep.subr.mxu0 0.0
    %892 = vmatpush1.msra.mxu0 0.0
    %893 = vmatprep.subr.mxu0 0.0
    %894 = vmatpush1.msra.mxu0 0.0
    %895 = vmatprep.subr.mxu0 0.0
    %896 = vmatpush1.msra.mxu0 0.0
    %897 = vmatprep.subr.mxu0 0.0
    %898 = vmatpush1.msra.mxu0 0.0
    %899 = vmatprep.subr.mxu0 0.0
    %900 = vmatpush1.msra.mxu0 0.0
    %901 = vmatprep.subr.mxu0 0.0
    %902 = vmatpush1.msra.mxu0 0.0
    %903 = vmatprep.subr.mxu0 0.0
    %904 = vmatpush1.msra.mxu0 0.0
    %905 = vmatprep.subr.mxu0 0.0
    %906 = vmatpush1.msra.mxu0 0.0
    %907 = vmatprep.subr.mxu0 0.0
    %908 = vmatpush1.msra.mxu0 0.0
    %909 = vmatprep.subr.mxu0 0.0
    %910 = vmatpush1.msra.mxu0 0.0
    %911 = vmatprep.subr.mxu0 0.0
    %912 = vmatpush1.msra.mxu0 0.0
    %913 = vmatprep.subr.mxu0 0.0
    %914 = vmatpush1.msra.mxu0 0.0
    %915 = vmatprep.subr.mxu0 0.0
    %916 = vmatpush1.msra.mxu0 0.0
    %917 = vmatprep.subr.mxu0 0.0
    %918 = vmatpush1.msra.mxu0 0.0
    %919 = vmatprep.subr.mxu0 0.0
    %920 = vmatpush1.msra.mxu0 0.0
    %921 = vmatprep.subr.mxu0 0.0
    %922 = vmatpush1.msra.mxu0 0.0
    %923 = vmatprep.subr.mxu0 0.0
    %924 = vmatpush1.msra.mxu0 0.0
    %925 = vmatprep.subr.mxu0 0.0
    %926 = vmatpush1.msra.mxu0 0.0
    %927 = vmatprep.subr.mxu0 0.0
    %928 = vmatpush1.msra.mxu0 0.0
    %929 = vmatprep.subr.mxu0 0.0
    %930 = vmatpush1.msra.mxu0 0.0
    %931 = vmatprep.subr.mxu0 0.0
    %932 = vmatpush1.msra.mxu0 0.0
    %933 = vmatprep.mubr.f32.mxu0 0.0
    %934 = vmatmul.mubr.f32.gmra.mrb[0].mxu0 %v864
    %v935 = vpop.f32.mrb[0].mxu0
    %v936 = vadd.f32 0.0, %v935
    %v937 = vpop.f32.mrb[0].mxu0
    %938 = vmatprep.mubr.f32.mxu0 0.0
    %939 = vmatmul.mubr.f32.gmra.mrb[0].mxu0 %v867
    %v940 = vpop.f32.mrb[0].mxu0
    %v941 = vadd.f32 0.0, %v940
    %v942 = vpop.f32.mrb[0].mxu0
    %943 = vdwg.mxu0
    %944 = vst.msk [vmem:[#allocation3 + $0x30] sm:$0xff] %vm89, %v936
    %v945 = vlaneseq
    %v946 = vshrl.u32 %v945, 7
    %v947 = vsub.s32 0, %v946
    %v948 = vrot.slane %v836, %v947
    %v949 = vmul.f32 %v936, %v948
    %v950 = vmul.f32 %v941, %v836
    %v951 = vadd.f32 %v824, %v950
    %v952 = vadd.f32 %v825, %v949
    %v953 = vmul.f32 %v949, %v949
    %v954 = vsel %vm89, %v953, 0.0
    %v955 = vrot.slane %v954, 4
    %v956 = vadd.f32 %v954, %v955
    %v957 = vrot.slane %v956, 2
    %v958 = vadd.f32 %v956, %v957
    %v959 = vrot.slane %v958, 1
    %v960 = vadd.f32 %v958, %v959
    %v961 = vadd.f32 %v834, %v960
    %v962 = vld [vmem:[%s0 + $0x7] sm:$0x1]
    %v963 = vld [vmem:[#allocation4 + $0x7] sm:$0x1]
    %v964 = vlaneseq
    %v965 = vshrl.u32 %v964, 7
    %v966 = vsub.s32 0, %v965
    %v967 = vrot.slane %v962, %v966
    %vm968 = vcmp.eq.s32.totalorder %v67, %v967
    %vm969 = vcmp.eq.s32.totalorder %v68, %v967
    %vm970 = vcmp.eq.s32.totalorder %v69, %v967
    %vm971 = vcmp.eq.s32.totalorder %v70, %v967
    %v972 = vsel %vm968, 1, 0
    %v973 = vsel %vm969, 1, 0
    %v974 = vsel %vm970, 1, 0
    %v975 = vsel %vm971, 1, 0
    %v976 = vcvt.s32.f32 %v972
    %v977 = vcvt.s32.f32 %v973
    %v978 = vcvt.s32.f32 %v974
    %v979 = vcvt.s32.f32 %v975
    %980 = vst.msk [vmem:[#allocation2] sm:$0xff] %vm89, %v976
    %981 = vst.msk [vmem:[#allocation2 + $0x8] sm:$0xff] %vm89, %v977
    %982 = vst.msk [vmem:[#allocation2 + $0x10] sm:$0xff] %vm89, %v978
    %983 = vst.msk [vmem:[#allocation2 + $0x18] sm:$0xff] %vm89, %v979
    %v984 = vld [vmem:[#allocation8] sm:$0xff]
    %v985 = vld [vmem:[#allocation8 + $0x8] sm:$0x1]
    %v986 = vld [vmem:[#allocation2] sm:$0xff]
    %v987 = vld [vmem:[#allocation2 + $0x8] sm:$0xff]
    %v988 = vld [vmem:[#allocation2 + $0x10] sm:$0xff]
    %v989 = vld [vmem:[#allocation2 + $0x18] sm:$0xff]
    %v991 = vsel %vm100, %v984, 0
    %v994 = vsel %vm100, %v985, 0
    %996 = vmatprep.subr.mxu0 0.0
    %997 = vmatpush1.msra.mxu0 %v986
    %998 = vmatprep.subr.mxu0 0.0
    %999 = vmatpush1.msra.mxu0 %v987
    %1000 = vmatprep.subr.mxu0 0.0
    %1001 = vmatpush1.msra.mxu0 %v988
    %1002 = vmatprep.subr.mxu0 0.0
    %1003 = vmatpush1.msra.mxu0 %v989
    %1004 = vmatprep.subr.mxu0 0.0
    %1005 = vmatpush1.msra.mxu0 0.0
    %1006 = vmatprep.subr.mxu0 0.0
    %1007 = vmatpush1.msra.mxu0 0.0
    %1008 = vmatprep.subr.mxu0 0.0
    %1009 = vmatpush1.msra.mxu0 0.0
    %1010 = vmatprep.subr.mxu0 0.0
    %1011 = vmatpush1.msra.mxu0 0.0
    %1012 = vmatprep.subr.mxu0 0.0
    %1013 = vmatpush1.msra.mxu0 0.0
    %1014 = vmatprep.subr.mxu0 0.0
    %1015 = vmatpush1.msra.mxu0 0.0
    %1016 = vmatprep.subr.mxu0 0.0
    %1017 = vmatpush1.msra.mxu0 0.0
    %1018 = vmatprep.subr.mxu0 0.0
    %1019 = vmatpush1.msra.mxu0 0.0
    %1020 = vmatprep.subr.mxu0 0.0
    %1021 = vmatpush1.msra.mxu0 0.0
    %1022 = vmatprep.subr.mxu0 0.0
    %1023 = vmatpush1.msra.mxu0 0.0
    %1024 = vmatprep.subr.mxu0 0.0
    %1025 = vmatpush1.msra.mxu0 0.0
    %1026 = vmatprep.subr.mxu0 0.0
    %1027 = vmatpush1.msra.mxu0 0.0
    %1028 = vmatprep.subr.mxu0 0.0
    %1029 = vmatpush1.msra.mxu0 0.0
    %1030 = vmatprep.subr.mxu0 0.0
    %1031 = vmatpush1.msra.mxu0 0.0
    %1032 = vmatprep.subr.mxu0 0.0
    %1033 = vmatpush1.msra.mxu0 0.0
    %1034 = vmatprep.subr.mxu0 0.0
    %1035 = vmatpush1.msra.mxu0 0.0
    %1036 = vmatprep.subr.mxu0 0.0
    %1037 = vmatpush1.msra.mxu0 0.0
    %1038 = vmatprep.subr.mxu0 0.0
    %1039 = vmatpush1.msra.mxu0 0.0
    %1040 = vmatprep.subr.mxu0 0.0
    %1041 = vmatpush1.msra.mxu0 0.0
    %1042 = vmatprep.subr.mxu0 0.0
    %1043 = vmatpush1.msra.mxu0 0.0
    %1044 = vmatprep.subr.mxu0 0.0
    %1045 = vmatpush1.msra.mxu0 0.0
    %1046 = vmatprep.subr.mxu0 0.0
    %1047 = vmatpush1.msra.mxu0 0.0
    %1048 = vmatprep.subr.mxu0 0.0
    %1049 = vmatpush1.msra.mxu0 0.0
    %1050 = vmatprep.subr.mxu0 0.0
    %1051 = vmatpush1.msra.mxu0 0.0
    %1052 = vmatprep.subr.mxu0 0.0
    %1053 = vmatpush1.msra.mxu0 0.0
    %1054 = vmatprep.subr.mxu0 0.0
    %1055 = vmatpush1.msra.mxu0 0.0
    %1056 = vmatprep.subr.mxu0 0.0
    %1057 = vmatpush1.msra.mxu0 0.0
    %1058 = vmatprep.subr.mxu0 0.0
    %1059 = vmatpush1.msra.mxu0 0.0
    %1060 = vmatprep.mubr.f32.mxu0 0.0
    %1061 = vmatmul.mubr.f32.gmra.mrb[0].mxu0 %v991
    %v1062 = vpop.f32.mrb[0].mxu0
    %v1063 = vadd.f32 0.0, %v1062
    %v1064 = vpop.f32.mrb[0].mxu0
    %1065 = vmatprep.mubr.f32.mxu0 0.0
    %1066 = vmatmul.mubr.f32.gmra.mrb[0].mxu0 %v994
    %v1067 = vpop.f32.mrb[0].mxu0
    %v1068 = vadd.f32 0.0, %v1067
    %v1069 = vpop.f32.mrb[0].mxu0
    %1070 = vdwg.mxu0
    %1071 = vst.msk [vmem:[#allocation3 + $0x38] sm:$0xff] %vm89, %v1063
    %v1072 = vlaneseq
    %v1073 = vshrl.u32 %v1072, 7
    %v1074 = vsub.s32 0, %v1073
    %v1075 = vrot.slane %v963, %v1074
    %v1076 = vmul.f32 %v1063, %v1075
    %v1077 = vmul.f32 %v1068, %v963
    %v1078 = vadd.f32 %v951, %v1077
    %v1079 = vadd.f32 %v952, %v1076
    %v1080 = vmul.f32 %v1076, %v1076
    %v1081 = vsel %vm89, %v1080, 0.0
    %v1082 = vrot.slane %v1081, 4
    %v1083 = vadd.f32 %v1081, %v1082
    %v1084 = vrot.slane %v1083, 2
    %v1085 = vadd.f32 %v1083, %v1084
    %v1086 = vrot.slane %v1085, 1
    %v1087 = vadd.f32 %v1085, %v1086
    %v1088 = vadd.f32 %v961, %v1087
    %v1089 = vstv %s63
    %v1090 = vadd.f32 %v1078, %v1089
    %v1091 = vmul.f32 %v1079, %v1079
    %v1092 = vsel %vm89, %v1091, 0.0
    %v1093 = vrot.slane %v1092, 4
    %v1094 = vadd.f32 %v1092, %v1093
    %v1095 = vrot.slane %v1094, 2
    %v1096 = vadd.f32 %v1094, %v1095
    %v1097 = vrot.slane %v1096, 1
    %v1098 = vadd.f32 %v1096, %v1097
    %v1099 = vsub.f32 %v1098, %v1088
    %v1100 = vmul.f32 %v1099, 0.5
    %v1101 = vld [vmem:[%s3] sm:$0xff]
    %v1102 = vld [vmem:[%s3 + $0x8] sm:$0xff]
    %v1103 = vld [vmem:[%s3 + $0x10] sm:$0xff]
    %v1104 = vld [vmem:[%s3 + $0x18] sm:$0xff]
    %v1105 = vld [vmem:[#allocation3] sm:$0xff]
    %v1106 = vld [vmem:[#allocation3 + $0x8] sm:$0xff]
    %v1107 = vld [vmem:[#allocation3 + $0x10] sm:$0xff]
    %v1108 = vld [vmem:[#allocation3 + $0x18] sm:$0xff]
    %v1109 = vld [vmem:[#allocation3 + $0x20] sm:$0xff]
    %v1110 = vld [vmem:[#allocation3 + $0x28] sm:$0xff]
    %v1111 = vld [vmem:[#allocation3 + $0x30] sm:$0xff]
    %v1112 = vld [vmem:[#allocation3 + $0x38] sm:$0xff]
    %v1113 = vstv %s64
    %vm1114 = vcmask 523264
    %v1116 = vsel %vm1114, %v1101, 0
    %v1119 = vsel %vm1114, %v1102, 0
    %v1122 = vsel %vm1114, %v1103, 0
    %v1125 = vsel %vm1114, %v1104, 0
    %1127 = vmatprep.subr.mxu0 0.0
    %1128 = vmatpush1.msra.mxu0 %v1105
    %1129 = vmatprep.subr.mxu0 0.0
    %1130 = vmatpush1.msra.mxu0 %v1106
    %1131 = vmatprep.subr.mxu0 0.0
    %1132 = vmatpush1.msra.mxu0 %v1107
    %1133 = vmatprep.subr.mxu0 0.0
    %1134 = vmatpush1.msra.mxu0 %v1108
    %1135 = vmatprep.subr.mxu0 0.0
    %1136 = vmatpush1.msra.mxu0 %v1109
    %1137 = vmatprep.subr.mxu0 0.0
    %1138 = vmatpush1.msra.mxu0 %v1110
    %1139 = vmatprep.subr.mxu0 0.0
    %1140 = vmatpush1.msra.mxu0 %v1111
    %1141 = vmatprep.subr.mxu0 0.0
    %1142 = vmatpush1.msra.mxu0 %v1112
    %1143 = vmatprep.subr.mxu0 0.0
    %1144 = vmatpush1.msra.mxu0 0.0
    %1145 = vmatprep.subr.mxu0 0.0
    %1146 = vmatpush1.msra.mxu0 0.0
    %1147 = vmatprep.subr.mxu0 0.0
    %1148 = vmatpush1.msra.mxu0 0.0
    %1149 = vmatprep.subr.mxu0 0.0
    %1150 = vmatpush1.msra.mxu0 0.0
    %1151 = vmatprep.subr.mxu0 0.0
    %1152 = vmatpush1.msra.mxu0 0.0
    %1153 = vmatprep.subr.mxu0 0.0
    %1154 = vmatpush1.msra.mxu0 0.0
    %1155 = vmatprep.subr.mxu0 0.0
    %1156 = vmatpush1.msra.mxu0 0.0
    %1157 = vmatprep.subr.mxu0 0.0
    %1158 = vmatpush1.msra.mxu0 0.0
    %1159 = vmatprep.subr.mxu0 0.0
    %1160 = vmatpush1.msra.mxu0 0.0
    %1161 = vmatprep.subr.mxu0 0.0
    %1162 = vmatpush1.msra.mxu0 0.0
    %1163 = vmatprep.subr.mxu0 0.0
    %1164 = vmatpush1.msra.mxu0 0.0
    %1165 = vmatprep.subr.mxu0 0.0
    %1166 = vmatpush1.msra.mxu0 0.0
    %1167 = vmatprep.subr.mxu0 0.0
    %1168 = vmatpush1.msra.mxu0 0.0
    %1169 = vmatprep.subr.mxu0 0.0
    %1170 = vmatpush1.msra.mxu0 0.0
    %1171 = vmatprep.subr.mxu0 0.0
    %1172 = vmatpush1.msra.mxu0 0.0
    %1173 = vmatprep.subr.mxu0 0.0
    %1174 = vmatpush1.msra.mxu0 0.0
    %1175 = vmatprep.subr.mxu0 0.0
    %1176 = vmatpush1.msra.mxu0 0.0
    %1177 = vmatprep.subr.mxu0 0.0
    %1178 = vmatpush1.msra.mxu0 0.0
    %1179 = vmatprep.subr.mxu0 0.0
    %1180 = vmatpush1.msra.mxu0 0.0
    %1181 = vmatprep.subr.mxu0 0.0
    %1182 = vmatpush1.msra.mxu0 0.0
    %1183 = vmatprep.subr.mxu0 0.0
    %1184 = vmatpush1.msra.mxu0 0.0
    %1185 = vmatprep.subr.mxu0 0.0
    %1186 = vmatpush1.msra.mxu0 0.0
    %1187 = vmatprep.subr.mxu0 0.0
    %1188 = vmatpush1.msra.mxu0 0.0
    %1189 = vmatprep.subr.mxu0 0.0
    %1190 = vmatpush1.msra.mxu0 0.0
    %1191 = vmatprep.mubr.f32.mxu0 0.0
    %1192 = vmatmul.mubr.f32.gmra.mrb[0].mxu0 %v1116
    %v1193 = vpop.f32.mrb[0].mxu0
    %v1194 = vadd.f32 %v1113, %v1193
    %v1195 = vpop.f32.mrb[0].mxu0
    %1196 = vmatprep.mubr.f32.mxu0 0.0
    %1197 = vmatmul.mubr.f32.gmra.mrb[0].mxu0 %v1119
    %v1198 = vpop.f32.mrb[0].mxu0
    %v1199 = vadd.f32 %v1113, %v1198
    %v1200 = vpop.f32.mrb[0].mxu0
    %1201 = vmatprep.mubr.f32.mxu0 0.0
    %1202 = vmatmul.mubr.f32.gmra.mrb[0].mxu0 %v1122
    %v1203 = vpop.f32.mrb[0].mxu0
    %v1204 = vadd.f32 %v1113, %v1203
    %v1205 = vpop.f32.mrb[0].mxu0
    %1206 = vmatprep.mubr.f32.mxu0 0.0
    %1207 = vmatmul.mubr.f32.gmra.mrb[0].mxu0 %v1125
    %v1208 = vpop.f32.mrb[0].mxu0
    %v1209 = vadd.f32 %v1113, %v1208
    %v1210 = vpop.f32.mrb[0].mxu0
    %1211 = vdwg.mxu0
    %v1212 = vmax.f32 %v1194, 0.0
    %v1213 = vmax.f32 %v1199, 0.0
    %v1214 = vmax.f32 %v1204, 0.0
    %v1215 = vmax.f32 %v1209, 0.0
    %v1216 = vld [vmem:[%s4] sm:$0xff]
    %v1217 = vld [vmem:[%s4 + $0x8] sm:$0xff]
    %v1218 = vld [vmem:[%s4 + $0x10] sm:$0xff]
    %v1219 = vld [vmem:[%s4 + $0x18] sm:$0xff]
    %1221 = vset.pattern.permute.xlu0 0
    %1222 = vperm.xlu0 %1221, %v1216
    %v1223 = vpop.permute.xlu0 %1222
    %1226 = vset.pattern.permute.xlu0 0
    %1227 = vperm.xlu0 %1226, %v1217
    %v1228 = vpop.permute.xlu0 %1227
    %1231 = vset.pattern.permute.xlu0 0
    %1232 = vperm.xlu0 %1231, %v1218
    %v1233 = vpop.permute.xlu0 %1232
    %1236 = vset.pattern.permute.xlu0 0
    %1237 = vperm.xlu0 %1236, %v1219
    %v1238 = vpop.permute.xlu0 %1237
    %v1240 = vmul.f32 %v1212, %v1223
    %v1241 = vmul.f32 %v1213, %v1228
    %v1242 = vmul.f32 %v1214, %v1233
    %v1243 = vmul.f32 %v1215, %v1238
    %v1244 = vsel %vm89, %v1240, 0.0
    %v1245 = vsel %vm89, %v1241, 0.0
    %v1246 = vadd.f32 %v1244, %v1245
    %v1247 = vsel %vm89, %v1242, 0.0
    %v1248 = vadd.f32 %v1246, %v1247
    %v1249 = vsel %vm89, %v1243, 0.0
    %v1250 = vadd.f32 %v1248, %v1249
    %v1251 = vrot.slane %v1250, 4
    %v1252 = vadd.f32 %v1250, %v1251
    %v1253 = vrot.slane %v1252, 2
    %v1254 = vadd.f32 %v1252, %v1253
    %v1255 = vrot.slane %v1254, 1
    %v1256 = vadd.f32 %v1254, %v1255
    %v1257 = vstv %s65
    %v1258 = vadd.f32 %v1256, %v1257
    %v1259 = vmax.f32 %v1258, 0.0
    %v1260 = vadd.f32 %v1090, %v1100
    %v1261 = vadd.f32 %v1260, %v1259
    %v1262 = vxor.u32 %v1261, 2147483648
    %v1263 = vmul.f32 %v1262, 1.442695
    %v1264 = vpow.pop %v1263
    %v1265 = vadd.f32 %v1264, 1.0
    %v1266 = vrcp.pop %v1265
    %v1267 = vmul.f32 1.0, %v1266
    %vm1268 = vcmask 57344
    %1269 = vst.msk [vmem:[#allocation11] sm:$0x1] %vm1268, %v1267
    // Predicated region
    $region38: #{tpu_custom_call.1} parent=1 // pred_check
      _
    $region39: #{tpu_custom_call.1} parent=1 // pred_check_branch
      %1271 = sbr.rel (0) target = $region41
    $region40: #{tpu_custom_call.1} parent=1 // pred_region
      %s1273 = ssub.s32 16, 16
      %1274 = vsyncadd [#allocation6], %s1273
      %s1276 = sshll.u32 [#allocation11], 4
      %s1277 = int_to_ptr.vmem [resolvable:$true] %s1276
      %1279 = dma.vmem_to_hbm [thread:$0]  %s1277, 16, %s6, [#allocation6]
    $region41: #{tpu_custom_call.1} parent=1 // pred_fallthru
      _
    // Predicated region
    $region42: #{tpu_custom_call.1} parent=1 // pred_check
      _
    $region43: #{tpu_custom_call.1} parent=1 // pred_check_branch
      %1281 = sbr.rel (0) target = $region45
    $region44: #{tpu_custom_call.1} parent=1 // pred_region
      %1282 = dma.done [#allocation6], 16
    $region45: #{tpu_custom_call.1} parent=1 // pred_fallthru
      _
    %1283 = vsyncpa [#allocation5], 1
    %1284 = vsyncpa [#allocation9], 1
    %1285 = vsyncpa [#allocation6], 1
    %1286 = vsyncpa [#allocation7], 1

</llo_original>
